<compile_context>
chip_gen: v7x
topology: tpu7x:2x2x1
jax: 0.10.0
libtpu: 0.0.40
codegen_flags: <defaults>
</compile_context>

<pallas_src>
import jax
import jax.numpy as jnp
import numpy as np
from jax.experimental import pallas as pl
from jax.experimental.pallas import tpu as pltpu

NUM_INPUTS = 6
NUM_OUTPUTS = 2
NUM_HIDDEN = 50          # nn.Linear(6, 50) / (50, 50) / (50, 2) as in __init__
MAX_OUTPUT = 1.0
TWO_PI = float(2.0 * np.pi)
LANE = 128               # TPU lane width
DEFAULT_TB = 512         # batch-tile (lanes) per grid step


def _round_up(n, m):
    return ((n + m - 1) // m) * m


def actor_kernel(x_ref, w1_ref, b1_ref, w2_ref, b2_ref,
                 w3_ref, b3_ref, w3s_ref, b3s_ref, o_ref):
    x = x_ref[...]                                    # (6, TB) f32, batch on lanes

    # Mask from the ORIGINAL x[0, :] (computed before MirrorState in forward()).
    mask = x[0:1, :] < 0.0                            # (1, TB)

    # MirrorState: negate rows 0, 2, 3, 5 and wrap row 2 into [0, 2*pi).
    # The PyTorch module mutates x in place, so the mirrored state feeds the
    # MLP for every row regardless of the mask.  Sign selection via iota.
    row = jax.lax.broadcasted_iota(jnp.int32, x.shape, 0)
    negate = (row == 0) | (row == 2) | (row == 3) | (row == 5)
    s = jnp.where(negate, -x, x)
    s = jnp.where(row == 2, jnp.mod(s, TWO_PI), s)

    # GetGreedyMove: three Linear layers with cos activation, scaled by
    # max_output.  Feature-major: y = W @ x + b, batch stays on lanes.
    y = jnp.cos(jnp.dot(w1_ref[...], s, preferred_element_type=jnp.float32)
                + b1_ref[...])
    y = jnp.cos(jnp.dot(w2_ref[...], y, preferred_element_type=jnp.float32)
                + b2_ref[...])
    a = MAX_OUTPUT * jnp.cos(
        jnp.dot(w3_ref[...], y, preferred_element_type=jnp.float32) + b3_ref[...])

    # MirrorAction: produced directly with the row-swapped output weights
    # (bit-identical to swapping the two rows of `a`), avoiding an in-kernel
    # sublane shuffle of a 2-row tensor.
    a_sw = MAX_OUTPUT * jnp.cos(
        jnp.dot(w3s_ref[...], y, preferred_element_type=jnp.float32) + b3s_ref[...])

    o_ref[...] = jnp.where(mask, a_sw, a)             # (2, TB)


def actor_forward(x, params, tb=DEFAULT_TB):
    """x: (B, 6) f32.  params = (w1,b1,w2,b2,w3,b3) in PyTorch layout:
    w_i (out_features, in_features), b_i (out_features, 1).  Returns (B, 2)."""
    w1, b1, w2, b2, w3, b3 = params
    B = x.shape[0]

    # Batch tile: multiple of 128 lanes; don't over-pad tiny batches.
    tb = min(tb, _round_up(B, LANE))
    bp = _round_up(B, tb)
    grid = (bp // tb,)

    # Feature-major, lane-dense layout; pad the batch to the tile boundary.
    xt = x.T.astype(jnp.float32)
    if bp != B:
        xt = jnp.pad(xt, ((0, 0), (0, bp - B)))       # (6, Bp)

    # Row-swapped output layer == MirrorAction applied to the greedy move.
    w3s = w3[::-1, :]
    b3s = b3[::-1, :]

    def const(shape):
        return pl.BlockSpec(shape, lambda i: (0, 0))  # resident across grid steps

    out_t = pl.pallas_call(
        actor_kernel,
        out_shape=jax.ShapeDtypeStruct((NUM_OUTPUTS, bp), jnp.float32),
        grid=grid,
        in_specs=[
            pl.BlockSpec((NUM_INPUTS, tb), lambda i: (0, i)),
            const((NUM_HIDDEN, NUM_INPUTS)), const((NUM_HIDDEN, 1)),
            const((NUM_HIDDEN, NUM_HIDDEN)), const((NUM_HIDDEN, 1)),
            const((NUM_OUTPUTS, NUM_HIDDEN)), const((NUM_OUTPUTS, 1)),
            const((NUM_OUTPUTS, NUM_HIDDEN)), const((NUM_OUTPUTS, 1)),
        ],
        out_specs=pl.BlockSpec((NUM_OUTPUTS, tb), lambda i: (0, i)),
        compiler_params=pltpu.CompilerParams(
            dimension_semantics=("parallel",)),   # batch axis is independent
    )(xt, w1, b1, w2, b2, w3, b3, w3s, b3s)

    return out_t.T[:B]                            # (B, 2)


def actor_forward_ref(x, params):
    """Pure-JAX reference mirroring the exact PyTorch forward semantics."""
    w1, b1, w2, b2, w3, b3 = params
    mask = x[:, 0:1] < 0.0
    sign = jnp.array([[-1.0, 1.0, -1.0, -1.0, 1.0, -1.0]], dtype=jnp.float32)
    s = x * sign
    s = s.at[:, 2].set(jnp.mod(s[:, 2], TWO_PI))
    y = jnp.cos(s @ w1.T + b1.T)
    y = jnp.cos(y @ w2.T + b2.T)
    a = jnp.cos(y @ w3.T + b3.T) * MAX_OUTPUT
    return jnp.where(mask, a[:, ::-1], a)


def init_params(key):
    """Deterministic init matching nn.Linear default U(-1/sqrt(fan_in), ...),
    stored in PyTorch (out_features, in_features) layout, bias (out, 1)."""
    ks = jax.random.split(key, 6)

    def linear(kw, kb, fan_in, fan_out):
        bound = 1.0 / np.sqrt(fan_in)
        w = jax.random.uniform(kw, (fan_out, fan_in), jnp.float32, -bound, bound)
        b = jax.random.uniform(kb, (fan_out, 1), jnp.float32, -bound, bound)
        return w, b

    w1, b1 = linear(ks[0], ks[1], NUM_INPUTS, NUM_HIDDEN)
    w2, b2 = linear(ks[2], ks[3], NUM_HIDDEN, NUM_HIDDEN)
    w3, b3 = linear(ks[4], ks[5], NUM_HIDDEN, NUM_OUTPUTS)
    return (w1, b1, w2, b2, w3, b3)


# TODO(synk): training=True path (GetNoisyMove's stateful noise accumulation)
# is not implemented; this kernel covers the default training=False forward.

if __name__ == "__main__":
    key = jax.random.PRNGKey(0)
    k_x, k_p = jax.random.split(key)
    params = init_params(k_p)

    # Small deterministic test (single grid step, B padded to 128 lanes).
    B = 8
    x = jax.random.normal(k_x, (B, NUM_INPUTS), dtype=jnp.float32) * 3.0
    out = jax.block_until_ready(actor_forward(x, params))
    ref = actor_forward_ref(x, params)
    np.testing.assert_allclose(np.asarray(out), np.asarray(ref), atol=5e-5, rtol=5e-5)
    assert out.shape == (B, NUM_OUTPUTS) and out.dtype == jnp.float32

    # Larger batch exercising a multi-step grid plus tail padding.
    B2 = 700
    x2 = jax.random.normal(k_x, (B2, NUM_INPUTS), dtype=jnp.float32) * 3.0
    out2 = jax.block_until_ready(actor_forward(x2, params))
    ref2 = actor_forward_ref(x2, params)
    np.testing.assert_allclose(np.asarray(out2), np.asarray(ref2), atol=5e-5, rtol=5e-5)

    print("KERNEL_OK")
</pallas_src>

<mosaic_0001>
module attributes {stable_mosaic.version = 11 : i64} {
  func.func @actor_kernel(%arg0: i32, %arg1: memref<6x128xf32, #tpu.memory_space<vmem>>, %arg2: memref<50x6xf32, #tpu.memory_space<vmem>>, %arg3: memref<50x1xf32, #tpu.memory_space<vmem>>, %arg4: memref<50x50xf32, #tpu.memory_space<vmem>>, %arg5: memref<50x1xf32, #tpu.memory_space<vmem>>, %arg6: memref<2x50xf32, #tpu.memory_space<vmem>>, %arg7: memref<2x1xf32, #tpu.memory_space<vmem>>, %arg8: memref<2x50xf32, #tpu.memory_space<vmem>>, %arg9: memref<2x1xf32, #tpu.memory_space<vmem>>, %arg10: memref<2x128xf32, #tpu.memory_space<vmem>>) attributes {dimension_semantics = [#tpu.dimension_semantics<parallel>], iteration_bounds = array<i64: 1>, scalar_prefetch = 0 : i64, scratch_operands = 0 : i64, tpu.core_type = #tpu.core_type<tc>, window_params = [{transform_indices = @transform_0, window_bounds = array<i64: 6, 128>}, {pipeline_mode = #tpu.pipeline_mode<synchronous>, transform_indices = @transform_1, window_bounds = array<i64: 50, 6>}, {pipeline_mode = #tpu.pipeline_mode<synchronous>, transform_indices = @transform_2, window_bounds = array<i64: 50, 1>}, {pipeline_mode = #tpu.pipeline_mode<synchronous>, transform_indices = @transform_3, window_bounds = array<i64: 50, 50>}, {pipeline_mode = #tpu.pipeline_mode<synchronous>, transform_indices = @transform_4, window_bounds = array<i64: 50, 1>}, {pipeline_mode = #tpu.pipeline_mode<synchronous>, transform_indices = @transform_5, window_bounds = array<i64: 2, 50>}, {pipeline_mode = #tpu.pipeline_mode<synchronous>, transform_indices = @transform_6, window_bounds = array<i64: 2, 1>}, {pipeline_mode = #tpu.pipeline_mode<synchronous>, transform_indices = @transform_7, window_bounds = array<i64: 2, 50>}, {pipeline_mode = #tpu.pipeline_mode<synchronous>, transform_indices = @transform_8, window_bounds = array<i64: 2, 1>}, {transform_indices = @transform_9, window_bounds = array<i64: 2, 128>}]} {
    %c0 = arith.constant 0 : index
    %c0_0 = arith.constant 0 : index
    %0 = vector.load %arg1[%c0, %c0_0] : memref<6x128xf32, #tpu.memory_space<vmem>>, vector<6x128xf32>
    %1 = vector.extract_strided_slice %0 {offsets = [0, 0], sizes = [1, 128], strides = [1, 1]} : vector<6x128xf32> to vector<1x128xf32>
    %cst = arith.constant 0.000000e+00 : f32
    %2 = vector.broadcast %cst : f32 to vector<1x128xf32>
    %3 = arith.cmpf olt, %1, %2 : vector<1x128xf32>
    %4 = tpu.iota {dimensions = array<i32: 0>} : vector<6x128xi32>
    %c0_i32 = arith.constant 0 : i32
    %5 = vector.broadcast %c0_i32 : i32 to vector<6x128xi32>
    %6 = arith.cmpi eq, %4, %5 : vector<6x128xi32>
    %c2_i32 = arith.constant 2 : i32
    %7 = vector.broadcast %c2_i32 : i32 to vector<6x128xi32>
    %8 = arith.cmpi eq, %4, %7 : vector<6x128xi32>
    %9 = arith.ori %6, %8 : vector<6x128xi1>
    %c3_i32 = arith.constant 3 : i32
    %10 = vector.broadcast %c3_i32 : i32 to vector<6x128xi32>
    %11 = arith.cmpi eq, %4, %10 : vector<6x128xi32>
    %12 = arith.ori %9, %11 : vector<6x128xi1>
    %c5_i32 = arith.constant 5 : i32
    %13 = vector.broadcast %c5_i32 : i32 to vector<6x128xi32>
    %14 = arith.cmpi eq, %4, %13 : vector<6x128xi32>
    %15 = arith.ori %12, %14 : vector<6x128xi1>
    %cst_1 = arith.constant 0.000000e+00 : f32
    %16 = vector.broadcast %cst_1 : f32 to vector<6x128xf32>
    %17 = arith.subf %16, %0 : vector<6x128xf32>
    %18 = arith.select %15, %17, %0 : vector<6x128xi1>, vector<6x128xf32>
    %c2_i32_2 = arith.constant 2 : i32
    %19 = vector.broadcast %c2_i32_2 : i32 to vector<6x128xi32>
    %20 = arith.cmpi eq, %4, %19 : vector<6x128xi32>
    %cst_3 = arith.constant 6.28318548 : f32
    %21 = vector.broadcast %cst_3 : f32 to vector<6x128xf32>
    %22 = arith.remf %18, %21 : vector<6x128xf32>
    %cst_4 = arith.constant 0.000000e+00 : f32
    %23 = vector.broadcast %cst_4 : f32 to vector<6x128xf32>
    %24 = arith.cmpf one, %22, %23 : vector<6x128xf32>
    %cst_5 = arith.constant 0.000000e+00 : f32
    %25 = vector.broadcast %cst_5 : f32 to vector<6x128xf32>
    %26 = arith.cmpf olt, %22, %25 : vector<6x128xf32>
    %cst_6 = arith.constant 0.000000e+00 : f32
    %27 = arith.cmpf olt, %cst_3, %cst_6 : f32
    %28 = vector.broadcast %27 : i1 to vector<6x128xi1>
    %29 = vector.broadcast %28 : vector<6x128xi1> to vector<6x128xi1>
    %30 = arith.xori %26, %29 : vector<6x128xi1>
    %31 = arith.andi %30, %24 : vector<6x128xi1>
    %32 = vector.broadcast %cst_3 : f32 to vector<6x128xf32>
    %33 = arith.addf %22, %32 : vector<6x128xf32>
    %34 = arith.select %31, %33, %22 : vector<6x128xi1>, vector<6x128xf32>
    %35 = arith.select %20, %34, %18 : vector<6x128xi1>, vector<6x128xf32>
    %c0_7 = arith.constant 0 : index
    %c0_8 = arith.constant 0 : index
    %36 = vector.load %arg2[%c0_7, %c0_8] : memref<50x6xf32, #tpu.memory_space<vmem>>, vector<50x6xf32>
    %cst_9 = arith.constant dense<0.000000e+00> : vector<50x128xf32>
    %37 = tpu.matmul %36, %35, %cst_9 {dimension_numbers = #tpu.dot_dimension_numbers<[1], [0], [0], [1], [0, 0, 1, 1], [], []>} : vector<50x6xf32>, vector<6x128xf32>, vector<50x128xf32> -> vector<50x128xf32>
    %c0_10 = arith.constant 0 : index
    %c0_11 = arith.constant 0 : index
    %38 = vector.load %arg3[%c0_10, %c0_11] : memref<50x1xf32, #tpu.memory_space<vmem>>, vector<50x1xf32>
    %39 = vector.broadcast %38 : vector<50x1xf32> to vector<50x128xf32>
    %40 = arith.addf %37, %39 : vector<50x128xf32>
    %41 = math.cos %40 : vector<50x128xf32>
    %c0_12 = arith.constant 0 : index
    %c0_13 = arith.constant 0 : index
    %42 = vector.load %arg4[%c0_12, %c0_13] : memref<50x50xf32, #tpu.memory_space<vmem>>, vector<50x50xf32>
    %cst_14 = arith.constant dense<0.000000e+00> : vector<50x128xf32>
    %43 = tpu.matmul %42, %41, %cst_14 {dimension_numbers = #tpu.dot_dimension_numbers<[1], [0], [0], [1], [0, 0, 1, 1], [], []>} : vector<50x50xf32>, vector<50x128xf32>, vector<50x128xf32> -> vector<50x128xf32>
    %c0_15 = arith.constant 0 : index
    %c0_16 = arith.constant 0 : index
    %44 = vector.load %arg5[%c0_15, %c0_16] : memref<50x1xf32, #tpu.memory_space<vmem>>, vector<50x1xf32>
    %45 = vector.broadcast %44 : vector<50x1xf32> to vector<50x128xf32>
    %46 = arith.addf %43, %45 : vector<50x128xf32>
    %47 = math.cos %46 : vector<50x128xf32>
    %c0_17 = arith.constant 0 : index
    %c0_18 = arith.constant 0 : index
    %48 = vector.load %arg6[%c0_17, %c0_18] : memref<2x50xf32, #tpu.memory_space<vmem>>, vector<2x50xf32>
    %cst_19 = arith.constant dense<0.000000e+00> : vector<2x128xf32>
    %49 = tpu.matmul %48, %47, %cst_19 {dimension_numbers = #tpu.dot_dimension_numbers<[1], [0], [0], [1], [0, 0, 1, 1], [], []>} : vector<2x50xf32>, vector<50x128xf32>, vector<2x128xf32> -> vector<2x128xf32>
    %c0_20 = arith.constant 0 : index
    %c0_21 = arith.constant 0 : index
    %50 = vector.load %arg7[%c0_20, %c0_21] : memref<2x1xf32, #tpu.memory_space<vmem>>, vector<2x1xf32>
    %51 = vector.broadcast %50 : vector<2x1xf32> to vector<2x128xf32>
    %52 = arith.addf %49, %51 : vector<2x128xf32>
    %53 = math.cos %52 : vector<2x128xf32>
    %cst_22 = arith.constant 1.000000e+00 : f32
    %54 = vector.broadcast %cst_22 : f32 to vector<2x128xf32>
    %55 = arith.mulf %54, %53 : vector<2x128xf32>
    %c0_23 = arith.constant 0 : index
    %c0_24 = arith.constant 0 : index
    %56 = vector.load %arg8[%c0_23, %c0_24] : memref<2x50xf32, #tpu.memory_space<vmem>>, vector<2x50xf32>
    %cst_25 = arith.constant dense<0.000000e+00> : vector<2x128xf32>
    %57 = tpu.matmul %56, %47, %cst_25 {dimension_numbers = #tpu.dot_dimension_numbers<[1], [0], [0], [1], [0, 0, 1, 1], [], []>} : vector<2x50xf32>, vector<50x128xf32>, vector<2x128xf32> -> vector<2x128xf32>
    %c0_26 = arith.constant 0 : index
    %c0_27 = arith.constant 0 : index
    %58 = vector.load %arg9[%c0_26, %c0_27] : memref<2x1xf32, #tpu.memory_space<vmem>>, vector<2x1xf32>
    %59 = vector.broadcast %58 : vector<2x1xf32> to vector<2x128xf32>
    %60 = arith.addf %57, %59 : vector<2x128xf32>
    %61 = math.cos %60 : vector<2x128xf32>
    %cst_28 = arith.constant 1.000000e+00 : f32
    %62 = vector.broadcast %cst_28 : f32 to vector<2x128xf32>
    %63 = arith.mulf %62, %61 : vector<2x128xf32>
    %64 = vector.shape_cast %3 : vector<1x128xi1> to vector<1x128xi1>
    %65 = vector.broadcast %64 : vector<1x128xi1> to vector<2x128xi1>
    %66 = arith.select %65, %63, %55 : vector<2x128xi1>, vector<2x128xf32>
    %c0_29 = arith.constant 0 : index
    %c0_30 = arith.constant 0 : index
    %67 = vector.load %arg10[%c0_29, %c0_30] : memref<2x128xf32, #tpu.memory_space<vmem>>, vector<2x128xf32>
    tpu.vector_store %arg10[%c0_29, %c0_30], %66 {strides = array<i32>} : memref<2x128xf32, #tpu.memory_space<vmem>>, vector<2x128xf32>,
    return
  }
  func.func @transform_0(%arg0: i32) -> (i32, i32) {
    %c0_i32 = arith.constant 0 : i32
    %c0_i32_0 = arith.constant 0 : i32
    return %c0_i32, %arg0 : i32, i32
  }
  func.func @transform_1(%arg0: i32) -> (i32, i32) {
    %c0_i32 = arith.constant 0 : i32
    %c0_i32_0 = arith.constant 0 : i32
    %c0_i32_1 = arith.constant 0 : i32
    return %c0_i32, %c0_i32_0 : i32, i32
  }
  func.func @transform_2(%arg0: i32) -> (i32, i32) {
    %c0_i32 = arith.constant 0 : i32
    %c0_i32_0 = arith.constant 0 : i32
    %c0_i32_1 = arith.constant 0 : i32
    return %c0_i32, %c0_i32_0 : i32, i32
  }
  func.func @transform_3(%arg0: i32) -> (i32, i32) {
    %c0_i32 = arith.constant 0 : i32
    %c0_i32_0 = arith.constant 0 : i32
    %c0_i32_1 = arith.constant 0 : i32
    return %c0_i32, %c0_i32_0 : i32, i32
  }
  func.func @transform_4(%arg0: i32) -> (i32, i32) {
    %c0_i32 = arith.constant 0 : i32
    %c0_i32_0 = arith.constant 0 : i32
    %c0_i32_1 = arith.constant 0 : i32
    return %c0_i32, %c0_i32_0 : i32, i32
  }
  func.func @transform_5(%arg0: i32) -> (i32, i32) {
    %c0_i32 = arith.constant 0 : i32
    %c0_i32_0 = arith.constant 0 : i32
    %c0_i32_1 = arith.constant 0 : i32
    return %c0_i32, %c0_i32_0 : i32, i32
  }
  func.func @transform_6(%arg0: i32) -> (i32, i32) {
    %c0_i32 = arith.constant 0 : i32
    %c0_i32_0 = arith.constant 0 : i32
    %c0_i32_1 = arith.constant 0 : i32
    return %c0_i32, %c0_i32_0 : i32, i32
  }
  func.func @transform_7(%arg0: i32) -> (i32, i32) {
    %c0_i32 = arith.constant 0 : i32
    %c0_i32_0 = arith.constant 0 : i32
    %c0_i32_1 = arith.constant 0 : i32
    return %c0_i32, %c0_i32_0 : i32, i32
  }
  func.func @transform_8(%arg0: i32) -> (i32, i32) {
    %c0_i32 = arith.constant 0 : i32
    %c0_i32_0 = arith.constant 0 : i32
    %c0_i32_1 = arith.constant 0 : i32
    return %c0_i32, %c0_i32_0 : i32, i32
  }
  func.func @transform_9(%arg0: i32) -> (i32, i32) {
    %c0_i32 = arith.constant 0 : i32
    %c0_i32_0 = arith.constant 0 : i32
    return %c0_i32, %arg0 : i32, i32
  }
}

</mosaic_0001>

<llo_original>
// kernel: tpu_custom_call.1
$region0: #{tpu_custom_call.1}
  #allocation0 [shape = 'u32[]', space=smem, size = 0x4, offset = 0x4, fixed_abs, tag = 'smem constant byte address 0x4 - core index']
  #allocation1 [shape = 'u32[144,128]{1,0:T(1,128)}', space=vmem, size = 0x12000, scoped, tag = 'internal scratch']
  %s0 = inlined_call_operand.vmem [shape: f32[6,128], index: 0, kind: input, shape index: {}]
  %s1 = inlined_call_operand.vmem [shape: f32[50,6], index: 1, kind: input, shape index: {}]
  %s2 = inlined_call_operand.vmem [shape: f32[50,1], index: 2, kind: input, shape index: {}]
  %s3 = inlined_call_operand.vmem [shape: f32[50,50], index: 3, kind: input, shape index: {}]
  %s4 = inlined_call_operand.vmem [shape: f32[50,1], index: 4, kind: input, shape index: {}]
  %s5 = inlined_call_operand.vmem [shape: f32[2,50], index: 5, kind: input, shape index: {}]
  %s6 = inlined_call_operand.vmem [shape: f32[2,1], index: 6, kind: input, shape index: {}]
  %s7 = inlined_call_operand.vmem [shape: f32[2,50], index: 7, kind: input, shape index: {}]
  %s8 = inlined_call_operand.vmem [shape: f32[2,1], index: 8, kind: input, shape index: {}]
  %s9 = inlined_call_operand.hbm [shape: f32[2,128], index: 9, kind: output, shape index: {}]
  %s10 = sld [smem:[#allocation0]]
  $region46: #{tpu_custom_call.1} parent=0
    _
  %s12 = ssub.s32 1, %s10
  %s13 = scalar_select 0, %s12, %s10
  $region1: #{tpu_custom_call.1} parent=0
    #allocation2 [shape = 'u8[1024]{0}', space=vmem, size = 0x400, scoped, tag = 'output window, operand 0, single buffered']
    #allocation3 [shape = 's32[1]{0}', space=sflag, size = 0x4, scoped, tag = 'scoped memory for tpu_custom_call.1']
    %14 = vsyncpa [#allocation3], 0
    // Predicated region
    $region2: #{tpu_custom_call.1} parent=1 // pred_check
      _
    $region3: #{tpu_custom_call.1} parent=1 // pred_check_branch
      %16 = sbr.rel (0) target = $region5
    $region4: #{tpu_custom_call.1} parent=1 // pred_region
      _
    $region5: #{tpu_custom_call.1} parent=1 // pred_fallthru
      _
    // Predicated region
    $region6: #{tpu_custom_call.1} parent=1 // pred_check
      _
    $region7: #{tpu_custom_call.1} parent=1 // pred_check_branch
      %18 = sbr.rel (0) target = $region9
    $region8: #{tpu_custom_call.1} parent=1 // pred_region
      _
    $region9: #{tpu_custom_call.1} parent=1 // pred_fallthru
      _
    // Predicated region
    $region10: #{tpu_custom_call.1} parent=1 // pred_check
      _
    $region11: #{tpu_custom_call.1} parent=1 // pred_check_branch
      %20 = sbr.rel (0) target = $region13
    $region12: #{tpu_custom_call.1} parent=1 // pred_region
      _
    $region13: #{tpu_custom_call.1} parent=1 // pred_fallthru
      _
    // Predicated region
    $region14: #{tpu_custom_call.1} parent=1 // pred_check
      _
    $region15: #{tpu_custom_call.1} parent=1 // pred_check_branch
      %22 = sbr.rel (0) target = $region17
    $region16: #{tpu_custom_call.1} parent=1 // pred_region
      _
    $region17: #{tpu_custom_call.1} parent=1 // pred_fallthru
      _
    // Predicated region
    $region18: #{tpu_custom_call.1} parent=1 // pred_check
      _
    $region19: #{tpu_custom_call.1} parent=1 // pred_check_branch
      %24 = sbr.rel (0) target = $region21
    $region20: #{tpu_custom_call.1} parent=1 // pred_region
      _
    $region21: #{tpu_custom_call.1} parent=1 // pred_fallthru
      _
    // Predicated region
    $region22: #{tpu_custom_call.1} parent=1 // pred_check
      _
    $region23: #{tpu_custom_call.1} parent=1 // pred_check_branch
      %26 = sbr.rel (0) target = $region25
    $region24: #{tpu_custom_call.1} parent=1 // pred_region
      _
    $region25: #{tpu_custom_call.1} parent=1 // pred_fallthru
      _
    // Predicated region
    $region26: #{tpu_custom_call.1} parent=1 // pred_check
      _
    $region27: #{tpu_custom_call.1} parent=1 // pred_check_branch
      %28 = sbr.rel (0) target = $region29
    $region28: #{tpu_custom_call.1} parent=1 // pred_region
      _
    $region29: #{tpu_custom_call.1} parent=1 // pred_fallthru
      _
    // Predicated region
    $region30: #{tpu_custom_call.1} parent=1 // pred_check
      _
    $region31: #{tpu_custom_call.1} parent=1 // pred_check_branch
      %30 = sbr.rel (0) target = $region33
    $region32: #{tpu_custom_call.1} parent=1 // pred_region
      _
    $region33: #{tpu_custom_call.1} parent=1 // pred_fallthru
      _
    // Predicated region
    $region34: #{tpu_custom_call.1} parent=1 // pred_check
      _
    $region35: #{tpu_custom_call.1} parent=1 // pred_check_branch
      %32 = sbr.rel (0) target = $region37
    $region36: #{tpu_custom_call.1} parent=1 // pred_region
      _
    $region37: #{tpu_custom_call.1} parent=1 // pred_fallthru
      _
    %v33 = vld [vmem:[%s0] sm:$0x3f]
    %vm34 = vcmp.lt.f32.partialorder %v33, 0.0
    %v35 = vlaneseq
    %v36 = vshrl.u32 %v35, 7
    %vm37 = vcmp.eq.s32.totalorder %v36, 0
    %vm38 = vcmp.eq.s32.totalorder %v36, 2
    %vm39 = vmor %vm37, %vm38
    %vm40 = vcmp.eq.s32.totalorder %v36, 3
    %vm41 = vmor %vm39, %vm40
    %vm42 = vcmp.eq.s32.totalorder %v36, 5
    %vm43 = vmor %vm41, %vm42
    %v44 = vsub.f32 0.0, %v33
    %v45 = vsel %vm43, %v44, %v33
    %v46 = vand.u32 2147483647, %v45
    %v47 = vrcp.pop 6.2831855
    %v48 = vmul.f32 %v46, %v47
    %v49 = vfloor.f32 %v48
    %v50 = vmul.f32 %v49, 6.2831855
    %v51 = vsub.f32 %v46, %v50
    %vm52 = vcmp.eq.f32.partialorder %v51, 6.2831855
    %v53 = vsel %vm52, 0.0, %v51
    %v54 = vand.u32 2147483647, %v53
    %v55 = vand.u32 %v45, 2147483648
    %v56 = vor.u32 %v54, %v55
    %vm57 = vcmp.ne.f32.partialorder %v56, 0.0
    %vm58 = vcmp.lt.f32.partialorder %v56, 0.0
    %vm59 = vmand %vm58, %vm57
    %v60 = vadd.f32 %v56, 6.2831855
    %v61 = vsel %vm59, %v60, %v56
    %v62 = vsel %vm38, %v61, %v45
    %v63 = vld [vmem:[%s1] sm:$0xff]
    %v64 = vld [vmem:[%s1 + $0x8] sm:$0xff]
    %v65 = vld [vmem:[%s1 + $0x10] sm:$0xff]
    %v66 = vld [vmem:[%s1 + $0x18] sm:$0xff]
    %v67 = vld [vmem:[%s1 + $0x20] sm:$0xff]
    %v68 = vld [vmem:[%s1 + $0x28] sm:$0xff]
    %v69 = vld [vmem:[%s1 + $0x30] sm:$0x3]
    %v70 = vld [vmem:[%s2] sm:$0xff]
    %v71 = vld [vmem:[%s2 + $0x8] sm:$0xff]
    %v72 = vld [vmem:[%s2 + $0x10] sm:$0xff]
    %v73 = vld [vmem:[%s2 + $0x18] sm:$0xff]
    %v74 = vld [vmem:[%s2 + $0x20] sm:$0xff]
    %v75 = vld [vmem:[%s2 + $0x28] sm:$0xff]
    %v76 = vld [vmem:[%s2 + $0x30] sm:$0x3]
    %78 = vset.pattern.permute.xlu0 0
    %79 = vperm.xlu0 %78, %v70
    %v80 = vpop.permute.xlu0 %79
    %83 = vset.pattern.permute.xlu0 0
    %84 = vperm.xlu0 %83, %v71
    %v85 = vpop.permute.xlu0 %84
    %88 = vset.pattern.permute.xlu0 0
    %89 = vperm.xlu0 %88, %v72
    %v90 = vpop.permute.xlu0 %89
    %93 = vset.pattern.permute.xlu0 0
    %94 = vperm.xlu0 %93, %v73
    %v95 = vpop.permute.xlu0 %94
    %98 = vset.pattern.permute.xlu0 0
    %99 = vperm.xlu0 %98, %v74
    %v100 = vpop.permute.xlu0 %99
    %103 = vset.pattern.permute.xlu0 0
    %104 = vperm.xlu0 %103, %v75
    %v105 = vpop.permute.xlu0 %104
    %108 = vset.pattern.permute.xlu0 0
    %109 = vperm.xlu0 %108, %v76
    %v110 = vpop.permute.xlu0 %109
    %vm112 = vcmask 48128
    %v114 = vsel %vm112, %v63, 0
    %v117 = vsel %vm112, %v64, 0
    %v120 = vsel %vm112, %v65, 0
    %v123 = vsel %vm112, %v66, 0
    %v126 = vsel %vm112, %v67, 0
    %v129 = vsel %vm112, %v68, 0
    %v132 = vsel %vm112, %v69, 0
    %vm134 = vcmask 1045504
    %v136 = vsel %vm134, %v62, 0
    %138 = vmatprep.subr.mxu0 0.0
    %139 = vmatpush1.msra.mxu0 %v136
    %140 = vmatprep.subr.mxu0 0.0
    %141 = vmatpush1.msra.mxu0 0.0
    %142 = vmatprep.subr.mxu0 0.0
    %143 = vmatpush1.msra.mxu0 0.0
    %144 = vmatprep.subr.mxu0 0.0
    %145 = vmatpush1.msra.mxu0 0.0
    %146 = vmatprep.subr.mxu0 0.0
    %147 = vmatpush1.msra.mxu0 0.0
    %148 = vmatprep.subr.mxu0 0.0
    %149 = vmatpush1.msra.mxu0 0.0
    %150 = vmatprep.subr.mxu0 0.0
    %151 = vmatpush1.msra.mxu0 0.0
    %152 = vmatprep.subr.mxu0 0.0
    %153 = vmatpush1.msra.mxu0 0.0
    %154 = vmatprep.subr.mxu0 0.0
    %155 = vmatpush1.msra.mxu0 0.0
    %156 = vmatprep.subr.mxu0 0.0
    %157 = vmatpush1.msra.mxu0 0.0
    %158 = vmatprep.subr.mxu0 0.0
    %159 = vmatpush1.msra.mxu0 0.0
    %160 = vmatprep.subr.mxu0 0.0
    %161 = vmatpush1.msra.mxu0 0.0
    %162 = vmatprep.subr.mxu0 0.0
    %163 = vmatpush1.msra.mxu0 0.0
    %164 = vmatprep.subr.mxu0 0.0
    %165 = vmatpush1.msra.mxu0 0.0
    %166 = vmatprep.subr.mxu0 0.0
    %167 = vmatpush1.msra.mxu0 0.0
    %168 = vmatprep.subr.mxu0 0.0
    %169 = vmatpush1.msra.mxu0 0.0
    %170 = vmatprep.subr.mxu0 0.0
    %171 = vmatpush1.msra.mxu0 0.0
    %172 = vmatprep.subr.mxu0 0.0
    %173 = vmatpush1.msra.mxu0 0.0
    %174 = vmatprep.subr.mxu0 0.0
    %175 = vmatpush1.msra.mxu0 0.0
    %176 = vmatprep.subr.mxu0 0.0
    %177 = vmatpush1.msra.mxu0 0.0
    %178 = vmatprep.subr.mxu0 0.0
    %179 = vmatpush1.msra.mxu0 0.0
    %180 = vmatprep.subr.mxu0 0.0
    %181 = vmatpush1.msra.mxu0 0.0
    %182 = vmatprep.subr.mxu0 0.0
    %183 = vmatpush1.msra.mxu0 0.0
    %184 = vmatprep.subr.mxu0 0.0
    %185 = vmatpush1.msra.mxu0 0.0
    %186 = vmatprep.subr.mxu0 0.0
    %187 = vmatpush1.msra.mxu0 0.0
    %188 = vmatprep.subr.mxu0 0.0
    %189 = vmatpush1.msra.mxu0 0.0
    %190 = vmatprep.subr.mxu0 0.0
    %191 = vmatpush1.msra.mxu0 0.0
    %192 = vmatprep.subr.mxu0 0.0
    %193 = vmatpush1.msra.mxu0 0.0
    %194 = vmatprep.subr.mxu0 0.0
    %195 = vmatpush1.msra.mxu0 0.0
    %196 = vmatprep.subr.mxu0 0.0
    %197 = vmatpush1.msra.mxu0 0.0
    %198 = vmatprep.subr.mxu0 0.0
    %199 = vmatpush1.msra.mxu0 0.0
    %200 = vmatprep.subr.mxu0 0.0
    %201 = vmatpush1.msra.mxu0 0.0
    %202 = vmatprep.mubr.f32.mxu0 0.0
    %203 = vmatmul.mubr.f32.gmra.mrb[0].mxu0 %v114
    %v204 = vpop.f32.mrb[0].mxu0
    %v205 = vadd.f32 %v80, %v204
    %v206 = vpop.f32.mrb[0].mxu0
    %207 = vmatprep.mubr.f32.mxu0 0.0
    %208 = vmatmul.mubr.f32.gmra.mrb[0].mxu0 %v117
    %v209 = vpop.f32.mrb[0].mxu0
    %v210 = vadd.f32 %v85, %v209
    %v211 = vpop.f32.mrb[0].mxu0
    %212 = vmatprep.mubr.f32.mxu0 0.0
    %213 = vmatmul.mubr.f32.gmra.mrb[0].mxu0 %v120
    %v214 = vpop.f32.mrb[0].mxu0
    %v215 = vadd.f32 %v90, %v214
    %v216 = vpop.f32.mrb[0].mxu0
    %217 = vmatprep.mubr.f32.mxu0 0.0
    %218 = vmatmul.mubr.f32.gmra.mrb[0].mxu0 %v123
    %v219 = vpop.f32.mrb[0].mxu0
    %v220 = vadd.f32 %v95, %v219
    %v221 = vpop.f32.mrb[0].mxu0
    %222 = vmatprep.mubr.f32.mxu0 0.0
    %223 = vmatmul.mubr.f32.gmra.mrb[0].mxu0 %v126
    %v224 = vpop.f32.mrb[0].mxu0
    %v225 = vadd.f32 %v100, %v224
    %v226 = vpop.f32.mrb[0].mxu0
    %227 = vmatprep.mubr.f32.mxu0 0.0
    %228 = vmatmul.mubr.f32.gmra.mrb[0].mxu0 %v129
    %v229 = vpop.f32.mrb[0].mxu0
    %v230 = vadd.f32 %v105, %v229
    %v231 = vpop.f32.mrb[0].mxu0
    %232 = vmatprep.mubr.f32.mxu0 0.0
    %233 = vmatmul.mubr.f32.gmra.mrb[0].mxu0 %v132
    %v234 = vpop.f32.mrb[0].mxu0
    %v235 = vadd.f32 %v110, %v234
    %v236 = vpop.f32.mrb[0].mxu0
    %237 = vdwg.mxu0
    %v238 = vand.u32 2147483647, %v205
    %vm239 = vcmp.le.f32.partialorder %v238, 0.7853982
    %vm240 = vcmp.lt.s32.totalorder %v205, 0
    %v241 = vand.u32 %v205, 2139095040
    %v242 = vshrl.u32 %v241, 23
    %v243 = vsub.s32 %v242, 127
    %v244 = vand.u32 2147483647, %v205
    %v245 = vand.u32 %v244, 8388607
    %v246 = vor.u32 %v245, 8388608
    %v247 = vsub.s32 0, %v246
    %v248 = vadd.s32 %v243, 1
    %vm249 = vcmp.gt.s32.totalorder %v248, 0
    %v250 = vsel %vm249, %v248, 0
    %v251 = vshrl.u32 %v250, 5
    %v252 = vand.u32 %v250, 31
    %v253 = vsub.s32 32, %v252
    %v254 = vshrl.u32 683565275, %v253
    %v255 = vshll.u32 683565275, %v252
    %v256 = vshrl.u32 2475754826, %v253
    %v257 = vor.u32 %v255, %v256
    %v258 = vshll.u32 2475754826, %v252
    %v259 = vshrl.u32 2131351028, %v253
    %v260 = vor.u32 %v258, %v259
    %v261 = vshll.u32 2131351028, %v252
    %v262 = vshrl.u32 2102212464, %v253
    %v263 = vor.u32 %v261, %v262
    %v264 = vshll.u32 2102212464, %v252
    %v265 = vshrl.u32 920167782, %v253
    %v266 = vor.u32 %v264, %v265
    %v267 = vshll.u32 920167782, %v252
    %v268 = vshrl.u32 1326507024, %v253
    %v269 = vor.u32 %v267, %v268
    %vm270 = vcmp.lt.s32.totalorder %v251, 1
    %vm271 = vcmp.lt.s32.totalorder %v251, 2
    %vm272 = vcmp.lt.s32.totalorder %v251, 3
    %vm273 = vcmp.lt.s32.totalorder %v251, 4
    %v274 = vsel %vm270, %v254, %v257
    %v275 = vsel %vm273, %v263, 2102212464
    %v276 = vsel %vm272, %v260, %v275
    %v277 = vsel %vm271, %v274, %v276
    %v278 = vsel %vm270, %v257, %v260
    %v279 = vsel %vm273, %v266, 920167782
    %v280 = vsel %vm272, %v263, %v279
    %v281 = vsel %vm271, %v278, %v280
    %v282 = vsel %vm270, %v260, %v263
    %v283 = vsel %vm273, %v269, 1326507024
    %v284 = vsel %vm272, %v266, %v283
    %v285 = vsel %vm271, %v282, %v284
    %v286 = vshll.u32 %v246, 8
    %v287 = vmul.u32.u64.compose %v286, %v285
    %v288 = vextract.low.u32 %v287
    %v289 = vextract.high.u32 %v287
    %v290 = vmul.u32.u64.compose %v286, %v281
    %v291 = vextract.low.u32 %v290
    %v292 = vextract.high.u32 %v290
    %v293 = vmul.u32 %v286, %v277
    %v294 = vadd.s32 %v289, %v291
    %vm295 = vc.u32 %v289, %v291
    %v296 = vadd.s32 %v292, 1
    %v297 = vsel %vm295, %v296, %v292
    %v298 = vadd.s32 %v293, %v297
    %v299 = vadd.s32 %v298, 536870912
    %v300 = vshrl.u32 %v299, 30
    %v301 = vshll.u32 %v300, 30
    %v302 = vsub.s32 %v298, %v301
    %vm303 = vcmp.lt.s32.totalorder %v302, 0
    %v304 = vsub.s32 0, %v302
    %v305 = vsel %vm303, %v304, %v302
    %v306 = vclz %v305
    %v307 = vsub.s32 %v306, 2
    %vm308 = vcmp.gt.s32.totalorder 0, %v307
    %v309 = vsel %vm308, 0, %v307
    %v310 = vsub.s32 32, %v309
    %v311 = vshll.u32 %v302, %v309
    %v312 = vshrl.u32 %v294, %v310
    %v313 = vor.u32 %v311, %v312
    %v314 = vsub.s32 4294967266, %v309
    %v315 = vadd.s32 %v314, 127
    %v316 = vshll.u32 %v315, 23
    %v317 = vor.u32 4788187, %v316
    %v318 = vand.u32 2147483647, %v317
    %v320 = vcvt.s32.f32 %v313
    %v321 = vmul.f32 %v320, %v318
    %v322 = vxor.u32 %v321, 2147483648
    %v323 = vsel %vm240, %v322, %v321
    %v324 = vsub.s32 4, %v300
    %v325 = vsel %vm240, %v324, %v300
    %v326 = vsel %vm239, %v205, %v323
    %v327 = vsel %vm239, 0, %v325
    %v328 = vcosq.f32.pop %v326
    %v329 = vsinq.f32.pop %v326
    %vm330 = vweird.f32 %v205
    %v331 = vand.u32 %v327, 3
    %vm332 = vcmp.lt.s32.totalorder %v331, 2
    %vm333 = vcmp.eq.s32.totalorder %v331, 0
    %v334 = vxor.u32 %v329, 2147483648
    %v335 = vsel %vm333, %v328, %v334
    %vm336 = vcmp.eq.s32.totalorder %v331, 2
    %v337 = vxor.u32 %v328, 2147483648
    %v338 = vsel %vm336, %v337, %v329
    %v339 = vsel %vm332, %v335, %v338
    %v340 = vsel %vm330, nan, %v339
    %v341 = vand.u32 2147483647, %v210
    %vm342 = vcmp.le.f32.partialorder %v341, 0.7853982
    %vm343 = vcmp.lt.s32.totalorder %v210, 0
    %v344 = vand.u32 %v210, 2139095040
    %v345 = vshrl.u32 %v344, 23
    %v346 = vsub.s32 %v345, 127
    %v347 = vand.u32 2147483647, %v210
    %v348 = vand.u32 %v347, 8388607
    %v349 = vor.u32 %v348, 8388608
    %v350 = vsub.s32 0, %v349
    %v351 = vadd.s32 %v346, 1
    %vm352 = vcmp.gt.s32.totalorder %v351, 0
    %v353 = vsel %vm352, %v351, 0
    %v354 = vshrl.u32 %v353, 5
    %v355 = vand.u32 %v353, 31
    %v356 = vsub.s32 32, %v355
    %v357 = vshrl.u32 683565275, %v356
    %v358 = vshll.u32 683565275, %v355
    %v359 = vshrl.u32 2475754826, %v356
    %v360 = vor.u32 %v358, %v359
    %v361 = vshll.u32 2475754826, %v355
    %v362 = vshrl.u32 2131351028, %v356
    %v363 = vor.u32 %v361, %v362
    %v364 = vshll.u32 2131351028, %v355
    %v365 = vshrl.u32 2102212464, %v356
    %v366 = vor.u32 %v364, %v365
    %v367 = vshll.u32 2102212464, %v355
    %v368 = vshrl.u32 920167782, %v356
    %v369 = vor.u32 %v367, %v368
    %v370 = vshll.u32 920167782, %v355
    %v371 = vshrl.u32 1326507024, %v356
    %v372 = vor.u32 %v370, %v371
    %vm373 = vcmp.lt.s32.totalorder %v354, 1
    %vm374 = vcmp.lt.s32.totalorder %v354, 2
    %vm375 = vcmp.lt.s32.totalorder %v354, 3
    %vm376 = vcmp.lt.s32.totalorder %v354, 4
    %v377 = vsel %vm373, %v357, %v360
    %v378 = vsel %vm376, %v366, 2102212464
    %v379 = vsel %vm375, %v363, %v378
    %v380 = vsel %vm374, %v377, %v379
    %v381 = vsel %vm373, %v360, %v363
    %v382 = vsel %vm376, %v369, 920167782
    %v383 = vsel %vm375, %v366, %v382
    %v384 = vsel %vm374, %v381, %v383
    %v385 = vsel %vm373, %v363, %v366
    %v386 = vsel %vm376, %v372, 1326507024
    %v387 = vsel %vm375, %v369, %v386
    %v388 = vsel %vm374, %v385, %v387
    %v389 = vshll.u32 %v349, 8
    %v390 = vmul.u32.u64.compose %v389, %v388
    %v391 = vextract.low.u32 %v390
    %v392 = vextract.high.u32 %v390
    %v393 = vmul.u32.u64.compose %v389, %v384
    %v394 = vextract.low.u32 %v393
    %v395 = vextract.high.u32 %v393
    %v396 = vmul.u32 %v389, %v380
    %v397 = vadd.s32 %v392, %v394
    %vm398 = vc.u32 %v392, %v394
    %v399 = vadd.s32 %v395, 1
    %v400 = vsel %vm398, %v399, %v395
    %v401 = vadd.s32 %v396, %v400
    %v402 = vadd.s32 %v401, 536870912
    %v403 = vshrl.u32 %v402, 30
    %v404 = vshll.u32 %v403, 30
    %v405 = vsub.s32 %v401, %v404
    %vm406 = vcmp.lt.s32.totalorder %v405, 0
    %v407 = vsub.s32 0, %v405
    %v408 = vsel %vm406, %v407, %v405
    %v409 = vclz %v408
    %v410 = vsub.s32 %v409, 2
    %vm411 = vcmp.gt.s32.totalorder 0, %v410
    %v412 = vsel %vm411, 0, %v410
    %v413 = vsub.s32 32, %v412
    %v414 = vshll.u32 %v405, %v412
    %v415 = vshrl.u32 %v397, %v413
    %v416 = vor.u32 %v414, %v415
    %v417 = vsub.s32 4294967266, %v412
    %v418 = vadd.s32 %v417, 127
    %v419 = vshll.u32 %v418, 23
    %v420 = vor.u32 4788187, %v419
    %v421 = vand.u32 2147483647, %v420
    %v423 = vcvt.s32.f32 %v416
    %v424 = vmul.f32 %v423, %v421
    %v425 = vxor.u32 %v424, 2147483648
    %v426 = vsel %vm343, %v425, %v424
    %v427 = vsub.s32 4, %v403
    %v428 = vsel %vm343, %v427, %v403
    %v429 = vsel %vm342, %v210, %v426
    %v430 = vsel %vm342, 0, %v428
    %v431 = vcosq.f32.pop %v429
    %v432 = vsinq.f32.pop %v429
    %vm433 = vweird.f32 %v210
    %v434 = vand.u32 %v430, 3
    %vm435 = vcmp.lt.s32.totalorder %v434, 2
    %vm436 = vcmp.eq.s32.totalorder %v434, 0
    %v437 = vxor.u32 %v432, 2147483648
    %v438 = vsel %vm436, %v431, %v437
    %vm439 = vcmp.eq.s32.totalorder %v434, 2
    %v440 = vxor.u32 %v431, 2147483648
    %v441 = vsel %vm439, %v440, %v432
    %v442 = vsel %vm435, %v438, %v441
    %v443 = vsel %vm433, nan, %v442
    %v444 = vand.u32 2147483647, %v215
    %vm445 = vcmp.le.f32.partialorder %v444, 0.7853982
    %vm446 = vcmp.lt.s32.totalorder %v215, 0
    %v447 = vand.u32 %v215, 2139095040
    %v448 = vshrl.u32 %v447, 23
    %v449 = vsub.s32 %v448, 127
    %v450 = vand.u32 2147483647, %v215
    %v451 = vand.u32 %v450, 8388607
    %v452 = vor.u32 %v451, 8388608
    %v453 = vsub.s32 0, %v452
    %v454 = vadd.s32 %v449, 1
    %vm455 = vcmp.gt.s32.totalorder %v454, 0
    %v456 = vsel %vm455, %v454, 0
    %v457 = vshrl.u32 %v456, 5
    %v458 = vand.u32 %v456, 31
    %v459 = vsub.s32 32, %v458
    %v460 = vshrl.u32 683565275, %v459
    %v461 = vshll.u32 683565275, %v458
    %v462 = vshrl.u32 2475754826, %v459
    %v463 = vor.u32 %v461, %v462
    %v464 = vshll.u32 2475754826, %v458
    %v465 = vshrl.u32 2131351028, %v459
    %v466 = vor.u32 %v464, %v465
    %v467 = vshll.u32 2131351028, %v458
    %v468 = vshrl.u32 2102212464, %v459
    %v469 = vor.u32 %v467, %v468
    %v470 = vshll.u32 2102212464, %v458
    %v471 = vshrl.u32 920167782, %v459
    %v472 = vor.u32 %v470, %v471
    %v473 = vshll.u32 920167782, %v458
    %v474 = vshrl.u32 1326507024, %v459
    %v475 = vor.u32 %v473, %v474
    %vm476 = vcmp.lt.s32.totalorder %v457, 1
    %vm477 = vcmp.lt.s32.totalorder %v457, 2
    %vm478 = vcmp.lt.s32.totalorder %v457, 3
    %vm479 = vcmp.lt.s32.totalorder %v457, 4
    %v480 = vsel %vm476, %v460, %v463
    %v481 = vsel %vm479, %v469, 2102212464
    %v482 = vsel %vm478, %v466, %v481
    %v483 = vsel %vm477, %v480, %v482
    %v484 = vsel %vm476, %v463, %v466
    %v485 = vsel %vm479, %v472, 920167782
    %v486 = vsel %vm478, %v469, %v485
    %v487 = vsel %vm477, %v484, %v486
    %v488 = vsel %vm476, %v466, %v469
    %v489 = vsel %vm479, %v475, 1326507024
    %v490 = vsel %vm478, %v472, %v489
    %v491 = vsel %vm477, %v488, %v490
    %v492 = vshll.u32 %v452, 8
    %v493 = vmul.u32.u64.compose %v492, %v491
    %v494 = vextract.low.u32 %v493
    %v495 = vextract.high.u32 %v493
    %v496 = vmul.u32.u64.compose %v492, %v487
    %v497 = vextract.low.u32 %v496
    %v498 = vextract.high.u32 %v496
    %v499 = vmul.u32 %v492, %v483
    %v500 = vadd.s32 %v495, %v497
    %vm501 = vc.u32 %v495, %v497
    %v502 = vadd.s32 %v498, 1
    %v503 = vsel %vm501, %v502, %v498
    %v504 = vadd.s32 %v499, %v503
    %v505 = vadd.s32 %v504, 536870912
    %v506 = vshrl.u32 %v505, 30
    %v507 = vshll.u32 %v506, 30
    %v508 = vsub.s32 %v504, %v507
    %vm509 = vcmp.lt.s32.totalorder %v508, 0
    %v510 = vsub.s32 0, %v508
    %v511 = vsel %vm509, %v510, %v508
    %v512 = vclz %v511
    %v513 = vsub.s32 %v512, 2
    %vm514 = vcmp.gt.s32.totalorder 0, %v513
    %v515 = vsel %vm514, 0, %v513
    %v516 = vsub.s32 32, %v515
    %v517 = vshll.u32 %v508, %v515
    %v518 = vshrl.u32 %v500, %v516
    %v519 = vor.u32 %v517, %v518
    %v520 = vsub.s32 4294967266, %v515
    %v521 = vadd.s32 %v520, 127
    %v522 = vshll.u32 %v521, 23
    %v523 = vor.u32 4788187, %v522
    %v524 = vand.u32 2147483647, %v523
    %v526 = vcvt.s32.f32 %v519
    %v527 = vmul.f32 %v526, %v524
    %v528 = vxor.u32 %v527, 2147483648
    %v529 = vsel %vm446, %v528, %v527
    %v530 = vsub.s32 4, %v506
    %v531 = vsel %vm446, %v530, %v506
    %v532 = vsel %vm445, %v215, %v529
    %v533 = vsel %vm445, 0, %v531
    %v534 = vcosq.f32.pop %v532
    %v535 = vsinq.f32.pop %v532
    %vm536 = vweird.f32 %v215
    %v537 = vand.u32 %v533, 3
    %vm538 = vcmp.lt.s32.totalorder %v537, 2
    %vm539 = vcmp.eq.s32.totalorder %v537, 0
    %v540 = vxor.u32 %v535, 2147483648
    %v541 = vsel %vm539, %v534, %v540
    %vm542 = vcmp.eq.s32.totalorder %v537, 2
    %v543 = vxor.u32 %v534, 2147483648
    %v544 = vsel %vm542, %v543, %v535
    %v545 = vsel %vm538, %v541, %v544
    %v546 = vsel %vm536, nan, %v545
    %v547 = vand.u32 2147483647, %v220
    %vm548 = vcmp.le.f32.partialorder %v547, 0.7853982
    %vm549 = vcmp.lt.s32.totalorder %v220, 0
    %v550 = vand.u32 %v220, 2139095040
    %v551 = vshrl.u32 %v550, 23
    %v552 = vsub.s32 %v551, 127
    %v553 = vand.u32 2147483647, %v220
    %v554 = vand.u32 %v553, 8388607
    %v555 = vor.u32 %v554, 8388608
    %v556 = vsub.s32 0, %v555
    %v557 = vadd.s32 %v552, 1
    %vm558 = vcmp.gt.s32.totalorder %v557, 0
    %v559 = vsel %vm558, %v557, 0
    %v560 = vshrl.u32 %v559, 5
    %v561 = vand.u32 %v559, 31
    %v562 = vsub.s32 32, %v561
    %v563 = vshrl.u32 683565275, %v562
    %v564 = vshll.u32 683565275, %v561
    %v565 = vshrl.u32 2475754826, %v562
    %v566 = vor.u32 %v564, %v565
    %v567 = vshll.u32 2475754826, %v561
    %v568 = vshrl.u32 2131351028, %v562
    %v569 = vor.u32 %v567, %v568
    %v570 = vshll.u32 2131351028, %v561
    %v571 = vshrl.u32 2102212464, %v562
    %v572 = vor.u32 %v570, %v571
    %v573 = vshll.u32 2102212464, %v561
    %v574 = vshrl.u32 920167782, %v562
    %v575 = vor.u32 %v573, %v574
    %v576 = vshll.u32 920167782, %v561
    %v577 = vshrl.u32 1326507024, %v562
    %v578 = vor.u32 %v576, %v577
    %vm579 = vcmp.lt.s32.totalorder %v560, 1
    %vm580 = vcmp.lt.s32.totalorder %v560, 2
    %vm581 = vcmp.lt.s32.totalorder %v560, 3
    %vm582 = vcmp.lt.s32.totalorder %v560, 4
    %v583 = vsel %vm579, %v563, %v566
    %v584 = vsel %vm582, %v572, 2102212464
    %v585 = vsel %vm581, %v569, %v584
    %v586 = vsel %vm580, %v583, %v585
    %v587 = vsel %vm579, %v566, %v569
    %v588 = vsel %vm582, %v575, 920167782
    %v589 = vsel %vm581, %v572, %v588
    %v590 = vsel %vm580, %v587, %v589
    %v591 = vsel %vm579, %v569, %v572
    %v592 = vsel %vm582, %v578, 1326507024
    %v593 = vsel %vm581, %v575, %v592
    %v594 = vsel %vm580, %v591, %v593
    %v595 = vshll.u32 %v555, 8
    %v596 = vmul.u32.u64.compose %v595, %v594
    %v597 = vextract.low.u32 %v596
    %v598 = vextract.high.u32 %v596
    %v599 = vmul.u32.u64.compose %v595, %v590
    %v600 = vextract.low.u32 %v599
    %v601 = vextract.high.u32 %v599
    %v602 = vmul.u32 %v595, %v586
    %v603 = vadd.s32 %v598, %v600
    %vm604 = vc.u32 %v598, %v600
    %v605 = vadd.s32 %v601, 1
    %v606 = vsel %vm604, %v605, %v601
    %v607 = vadd.s32 %v602, %v606
    %v608 = vadd.s32 %v607, 536870912
    %v609 = vshrl.u32 %v608, 30
    %v610 = vshll.u32 %v609, 30
    %v611 = vsub.s32 %v607, %v610
    %vm612 = vcmp.lt.s32.totalorder %v611, 0
    %v613 = vsub.s32 0, %v611
    %v614 = vsel %vm612, %v613, %v611
    %v615 = vclz %v614
    %v616 = vsub.s32 %v615, 2
    %vm617 = vcmp.gt.s32.totalorder 0, %v616
    %v618 = vsel %vm617, 0, %v616
    %v619 = vsub.s32 32, %v618
    %v620 = vshll.u32 %v611, %v618
    %v621 = vshrl.u32 %v603, %v619
    %v622 = vor.u32 %v620, %v621
    %v623 = vsub.s32 4294967266, %v618
    %v624 = vadd.s32 %v623, 127
    %v625 = vshll.u32 %v624, 23
    %v626 = vor.u32 4788187, %v625
    %v627 = vand.u32 2147483647, %v626
    %v629 = vcvt.s32.f32 %v622
    %v630 = vmul.f32 %v629, %v627
    %v631 = vxor.u32 %v630, 2147483648
    %v632 = vsel %vm549, %v631, %v630
    %v633 = vsub.s32 4, %v609
    %v634 = vsel %vm549, %v633, %v609
    %v635 = vsel %vm548, %v220, %v632
    %v636 = vsel %vm548, 0, %v634
    %v637 = vcosq.f32.pop %v635
    %v638 = vsinq.f32.pop %v635
    %vm639 = vweird.f32 %v220
    %v640 = vand.u32 %v636, 3
    %vm641 = vcmp.lt.s32.totalorder %v640, 2
    %vm642 = vcmp.eq.s32.totalorder %v640, 0
    %v643 = vxor.u32 %v638, 2147483648
    %v644 = vsel %vm642, %v637, %v643
    %vm645 = vcmp.eq.s32.totalorder %v640, 2
    %v646 = vxor.u32 %v637, 2147483648
    %v647 = vsel %vm645, %v646, %v638
    %v648 = vsel %vm641, %v644, %v647
    %v649 = vsel %vm639, nan, %v648
    %v650 = vand.u32 2147483647, %v225
    %vm651 = vcmp.le.f32.partialorder %v650, 0.7853982
    %vm652 = vcmp.lt.s32.totalorder %v225, 0
    %v653 = vand.u32 %v225, 2139095040
    %v654 = vshrl.u32 %v653, 23
    %v655 = vsub.s32 %v654, 127
    %v656 = vand.u32 2147483647, %v225
    %v657 = vand.u32 %v656, 8388607
    %v658 = vor.u32 %v657, 8388608
    %v659 = vsub.s32 0, %v658
    %v660 = vadd.s32 %v655, 1
    %vm661 = vcmp.gt.s32.totalorder %v660, 0
    %v662 = vsel %vm661, %v660, 0
    %v663 = vshrl.u32 %v662, 5
    %v664 = vand.u32 %v662, 31
    %v665 = vsub.s32 32, %v664
    %v666 = vshrl.u32 683565275, %v665
    %v667 = vshll.u32 683565275, %v664
    %v668 = vshrl.u32 2475754826, %v665
    %v669 = vor.u32 %v667, %v668
    %v670 = vshll.u32 2475754826, %v664
    %v671 = vshrl.u32 2131351028, %v665
    %v672 = vor.u32 %v670, %v671
    %v673 = vshll.u32 2131351028, %v664
    %v674 = vshrl.u32 2102212464, %v665
    %v675 = vor.u32 %v673, %v674
    %v676 = vshll.u32 2102212464, %v664
    %v677 = vshrl.u32 920167782, %v665
    %v678 = vor.u32 %v676, %v677
    %v679 = vshll.u32 920167782, %v664
    %v680 = vshrl.u32 1326507024, %v665
    %v681 = vor.u32 %v679, %v680
    %vm682 = vcmp.lt.s32.totalorder %v663, 1
    %vm683 = vcmp.lt.s32.totalorder %v663, 2
    %vm684 = vcmp.lt.s32.totalorder %v663, 3
    %vm685 = vcmp.lt.s32.totalorder %v663, 4
    %v686 = vsel %vm682, %v666, %v669
    %v687 = vsel %vm685, %v675, 2102212464
    %v688 = vsel %vm684, %v672, %v687
    %v689 = vsel %vm683, %v686, %v688
    %v690 = vsel %vm682, %v669, %v672
    %v691 = vsel %vm685, %v678, 920167782
    %v692 = vsel %vm684, %v675, %v691
    %v693 = vsel %vm683, %v690, %v692
    %v694 = vsel %vm682, %v672, %v675
    %v695 = vsel %vm685, %v681, 1326507024
    %v696 = vsel %vm684, %v678, %v695
    %v697 = vsel %vm683, %v694, %v696
    %v698 = vshll.u32 %v658, 8
    %v699 = vmul.u32.u64.compose %v698, %v697
    %v700 = vextract.low.u32 %v699
    %v701 = vextract.high.u32 %v699
    %v702 = vmul.u32.u64.compose %v698, %v693
    %v703 = vextract.low.u32 %v702
    %v704 = vextract.high.u32 %v702
    %v705 = vmul.u32 %v698, %v689
    %v706 = vadd.s32 %v701, %v703
    %vm707 = vc.u32 %v701, %v703
    %v708 = vadd.s32 %v704, 1
    %v709 = vsel %vm707, %v708, %v704
    %v710 = vadd.s32 %v705, %v709
    %v711 = vadd.s32 %v710, 536870912
    %v712 = vshrl.u32 %v711, 30
    %v713 = vshll.u32 %v712, 30
    %v714 = vsub.s32 %v710, %v713
    %vm715 = vcmp.lt.s32.totalorder %v714, 0
    %v716 = vsub.s32 0, %v714
    %v717 = vsel %vm715, %v716, %v714
    %v718 = vclz %v717
    %v719 = vsub.s32 %v718, 2
    %vm720 = vcmp.gt.s32.totalorder 0, %v719
    %v721 = vsel %vm720, 0, %v719
    %v722 = vsub.s32 32, %v721
    %v723 = vshll.u32 %v714, %v721
    %v724 = vshrl.u32 %v706, %v722
    %v725 = vor.u32 %v723, %v724
    %v726 = vsub.s32 4294967266, %v721
    %v727 = vadd.s32 %v726, 127
    %v728 = vshll.u32 %v727, 23
    %v729 = vor.u32 4788187, %v728
    %v730 = vand.u32 2147483647, %v729
    %v732 = vcvt.s32.f32 %v725
    %v733 = vmul.f32 %v732, %v730
    %v734 = vxor.u32 %v733, 2147483648
    %v735 = vsel %vm652, %v734, %v733
    %v736 = vsub.s32 4, %v712
    %v737 = vsel %vm652, %v736, %v712
    %v738 = vsel %vm651, %v225, %v735
    %v739 = vsel %vm651, 0, %v737
    %v740 = vcosq.f32.pop %v738
    %v741 = vsinq.f32.pop %v738
    %vm742 = vweird.f32 %v225
    %v743 = vand.u32 %v739, 3
    %vm744 = vcmp.lt.s32.totalorder %v743, 2
    %vm745 = vcmp.eq.s32.totalorder %v743, 0
    %v746 = vxor.u32 %v741, 2147483648
    %v747 = vsel %vm745, %v740, %v746
    %vm748 = vcmp.eq.s32.totalorder %v743, 2
    %v749 = vxor.u32 %v740, 2147483648
    %v750 = vsel %vm748, %v749, %v741
    %v751 = vsel %vm744, %v747, %v750
    %v752 = vsel %vm742, nan, %v751
    %v753 = vand.u32 2147483647, %v230
    %vm754 = vcmp.le.f32.partialorder %v753, 0.7853982
    %vm755 = vcmp.lt.s32.totalorder %v230, 0
    %v756 = vand.u32 %v230, 2139095040
    %v757 = vshrl.u32 %v756, 23
    %v758 = vsub.s32 %v757, 127
    %v759 = vand.u32 2147483647, %v230
    %v760 = vand.u32 %v759, 8388607
    %v761 = vor.u32 %v760, 8388608
    %v762 = vsub.s32 0, %v761
    %v763 = vadd.s32 %v758, 1
    %vm764 = vcmp.gt.s32.totalorder %v763, 0
    %v765 = vsel %vm764, %v763, 0
    %v766 = vshrl.u32 %v765, 5
    %v767 = vand.u32 %v765, 31
    %v768 = vsub.s32 32, %v767
    %v769 = vshrl.u32 683565275, %v768
    %v770 = vshll.u32 683565275, %v767
    %v771 = vshrl.u32 2475754826, %v768
    %v772 = vor.u32 %v770, %v771
    %v773 = vshll.u32 2475754826, %v767
    %v774 = vshrl.u32 2131351028, %v768
    %v775 = vor.u32 %v773, %v774
    %v776 = vshll.u32 2131351028, %v767
    %v777 = vshrl.u32 2102212464, %v768
    %v778 = vor.u32 %v776, %v777
    %v779 = vshll.u32 2102212464, %v767
    %v780 = vshrl.u32 920167782, %v768
    %v781 = vor.u32 %v779, %v780
    %v782 = vshll.u32 920167782, %v767
    %v783 = vshrl.u32 1326507024, %v768
    %v784 = vor.u32 %v782, %v783
    %vm785 = vcmp.lt.s32.totalorder %v766, 1
    %vm786 = vcmp.lt.s32.totalorder %v766, 2
    %vm787 = vcmp.lt.s32.totalorder %v766, 3
    %vm788 = vcmp.lt.s32.totalorder %v766, 4
    %v789 = vsel %vm785, %v769, %v772
    %v790 = vsel %vm788, %v778, 2102212464
    %v791 = vsel %vm787, %v775, %v790
    %v792 = vsel %vm786, %v789, %v791
    %v793 = vsel %vm785, %v772, %v775
    %v794 = vsel %vm788, %v781, 920167782
    %v795 = vsel %vm787, %v778, %v794
    %v796 = vsel %vm786, %v793, %v795
    %v797 = vsel %vm785, %v775, %v778
    %v798 = vsel %vm788, %v784, 1326507024
    %v799 = vsel %vm787, %v781, %v798
    %v800 = vsel %vm786, %v797, %v799
    %v801 = vshll.u32 %v761, 8
    %v802 = vmul.u32.u64.compose %v801, %v800
    %v803 = vextract.low.u32 %v802
    %v804 = vextract.high.u32 %v802
    %v805 = vmul.u32.u64.compose %v801, %v796
    %v806 = vextract.low.u32 %v805
    %v807 = vextract.high.u32 %v805
    %v808 = vmul.u32 %v801, %v792
    %v809 = vadd.s32 %v804, %v806
    %vm810 = vc.u32 %v804, %v806
    %v811 = vadd.s32 %v807, 1
    %v812 = vsel %vm810, %v811, %v807
    %v813 = vadd.s32 %v808, %v812
    %v814 = vadd.s32 %v813, 536870912
    %v815 = vshrl.u32 %v814, 30
    %v816 = vshll.u32 %v815, 30
    %v817 = vsub.s32 %v813, %v816
    %vm818 = vcmp.lt.s32.totalorder %v817, 0
    %v819 = vsub.s32 0, %v817
    %v820 = vsel %vm818, %v819, %v817
    %v821 = vclz %v820
    %v822 = vsub.s32 %v821, 2
    %vm823 = vcmp.gt.s32.totalorder 0, %v822
    %v824 = vsel %vm823, 0, %v822
    %v825 = vsub.s32 32, %v824
    %v826 = vshll.u32 %v817, %v824
    %v827 = vshrl.u32 %v809, %v825
    %v828 = vor.u32 %v826, %v827
    %v829 = vsub.s32 4294967266, %v824
    %v830 = vadd.s32 %v829, 127
    %v831 = vshll.u32 %v830, 23
    %v832 = vor.u32 4788187, %v831
    %v833 = vand.u32 2147483647, %v832
    %v835 = vcvt.s32.f32 %v828
    %v836 = vmul.f32 %v835, %v833
    %v837 = vxor.u32 %v836, 2147483648
    %v838 = vsel %vm755, %v837, %v836
    %v839 = vsub.s32 4, %v815
    %v840 = vsel %vm755, %v839, %v815
    %v841 = vsel %vm754, %v230, %v838
    %v842 = vsel %vm754, 0, %v840
    %v843 = vcosq.f32.pop %v841
    %v844 = vsinq.f32.pop %v841
    %vm845 = vweird.f32 %v230
    %v846 = vand.u32 %v842, 3
    %vm847 = vcmp.lt.s32.totalorder %v846, 2
    %vm848 = vcmp.eq.s32.totalorder %v846, 0
    %v849 = vxor.u32 %v844, 2147483648
    %v850 = vsel %vm848, %v843, %v849
    %vm851 = vcmp.eq.s32.totalorder %v846, 2
    %v852 = vxor.u32 %v843, 2147483648
    %v853 = vsel %vm851, %v852, %v844
    %v854 = vsel %vm847, %v850, %v853
    %v855 = vsel %vm845, nan, %v854
    %v856 = vand.u32 2147483647, %v235
    %vm857 = vcmp.le.f32.partialorder %v856, 0.7853982
    %vm858 = vcmp.lt.s32.totalorder %v235, 0
    %v859 = vand.u32 %v235, 2139095040
    %v860 = vshrl.u32 %v859, 23
    %v861 = vsub.s32 %v860, 127
    %v862 = vand.u32 2147483647, %v235
    %v863 = vand.u32 %v862, 8388607
    %v864 = vor.u32 %v863, 8388608
    %v865 = vsub.s32 0, %v864
    %v866 = vadd.s32 %v861, 1
    %vm867 = vcmp.gt.s32.totalorder %v866, 0
    %v868 = vsel %vm867, %v866, 0
    %v869 = vshrl.u32 %v868, 5
    %v870 = vand.u32 %v868, 31
    %v871 = vsub.s32 32, %v870
    %v872 = vshrl.u32 683565275, %v871
    %v873 = vshll.u32 683565275, %v870
    %v874 = vshrl.u32 2475754826, %v871
    %v875 = vor.u32 %v873, %v874
    %v876 = vshll.u32 2475754826, %v870
    %v877 = vshrl.u32 2131351028, %v871
    %v878 = vor.u32 %v876, %v877
    %v879 = vshll.u32 2131351028, %v870
    %v880 = vshrl.u32 2102212464, %v871
    %v881 = vor.u32 %v879, %v880
    %v882 = vshll.u32 2102212464, %v870
    %v883 = vshrl.u32 920167782, %v871
    %v884 = vor.u32 %v882, %v883
    %v885 = vshll.u32 920167782, %v870
    %v886 = vshrl.u32 1326507024, %v871
    %v887 = vor.u32 %v885, %v886
    %vm888 = vcmp.lt.s32.totalorder %v869, 1
    %vm889 = vcmp.lt.s32.totalorder %v869, 2
    %vm890 = vcmp.lt.s32.totalorder %v869, 3
    %vm891 = vcmp.lt.s32.totalorder %v869, 4
    %v892 = vsel %vm888, %v872, %v875
    %v893 = vsel %vm891, %v881, 2102212464
    %v894 = vsel %vm890, %v878, %v893
    %v895 = vsel %vm889, %v892, %v894
    %v896 = vsel %vm888, %v875, %v878
    %v897 = vsel %vm891, %v884, 920167782
    %v898 = vsel %vm890, %v881, %v897
    %v899 = vsel %vm889, %v896, %v898
    %v900 = vsel %vm888, %v878, %v881
    %v901 = vsel %vm891, %v887, 1326507024
    %v902 = vsel %vm890, %v884, %v901
    %v903 = vsel %vm889, %v900, %v902
    %v904 = vshll.u32 %v864, 8
    %v905 = vmul.u32.u64.compose %v904, %v903
    %v906 = vextract.low.u32 %v905
    %v907 = vextract.high.u32 %v905
    %v908 = vmul.u32.u64.compose %v904, %v899
    %v909 = vextract.low.u32 %v908
    %v910 = vextract.high.u32 %v908
    %v911 = vmul.u32 %v904, %v895
    %v912 = vadd.s32 %v907, %v909
    %vm913 = vc.u32 %v907, %v909
    %v914 = vadd.s32 %v910, 1
    %v915 = vsel %vm913, %v914, %v910
    %v916 = vadd.s32 %v911, %v915
    %v917 = vadd.s32 %v916, 536870912
    %v918 = vshrl.u32 %v917, 30
    %v919 = vshll.u32 %v918, 30
    %v920 = vsub.s32 %v916, %v919
    %vm921 = vcmp.lt.s32.totalorder %v920, 0
    %v922 = vsub.s32 0, %v920
    %v923 = vsel %vm921, %v922, %v920
    %v924 = vclz %v923
    %v925 = vsub.s32 %v924, 2
    %vm926 = vcmp.gt.s32.totalorder 0, %v925
    %v927 = vsel %vm926, 0, %v925
    %v928 = vsub.s32 32, %v927
    %v929 = vshll.u32 %v920, %v927
    %v930 = vshrl.u32 %v912, %v928
    %v931 = vor.u32 %v929, %v930
    %v932 = vsub.s32 4294967266, %v927
    %v933 = vadd.s32 %v932, 127
    %v934 = vshll.u32 %v933, 23
    %v935 = vor.u32 4788187, %v934
    %v936 = vand.u32 2147483647, %v935
    %v938 = vcvt.s32.f32 %v931
    %v939 = vmul.f32 %v938, %v936
    %v940 = vxor.u32 %v939, 2147483648
    %v941 = vsel %vm858, %v940, %v939
    %v942 = vsub.s32 4, %v918
    %v943 = vsel %vm858, %v942, %v918
    %v944 = vsel %vm857, %v235, %v941
    %v945 = vsel %vm857, 0, %v943
    %v946 = vcosq.f32.pop %v944
    %v947 = vsinq.f32.pop %v944
    %vm948 = vweird.f32 %v235
    %v949 = vand.u32 %v945, 3
    %vm950 = vcmp.lt.s32.totalorder %v949, 2
    %vm951 = vcmp.eq.s32.totalorder %v949, 0
    %v952 = vxor.u32 %v947, 2147483648
    %v953 = vsel %vm951, %v946, %v952
    %vm954 = vcmp.eq.s32.totalorder %v949, 2
    %v955 = vxor.u32 %v946, 2147483648
    %v956 = vsel %vm954, %v955, %v947
    %v957 = vsel %vm950, %v953, %v956
    %v958 = vsel %vm948, nan, %v957
    %v959 = vld [vmem:[%s3] sm:$0xff]
    %v960 = vld [vmem:[%s3 + $0x8] sm:$0xff]
    %v961 = vld [vmem:[%s3 + $0x10] sm:$0xff]
    %v962 = vld [vmem:[%s3 + $0x18] sm:$0xff]
    %v963 = vld [vmem:[%s3 + $0x20] sm:$0xff]
    %v964 = vld [vmem:[%s3 + $0x28] sm:$0xff]
    %v965 = vld [vmem:[%s3 + $0x30] sm:$0x3]
    %v966 = vld [vmem:[%s4] sm:$0xff]
    %v967 = vld [vmem:[%s4 + $0x8] sm:$0xff]
    %v968 = vld [vmem:[%s4 + $0x10] sm:$0xff]
    %v969 = vld [vmem:[%s4 + $0x18] sm:$0xff]
    %v970 = vld [vmem:[%s4 + $0x20] sm:$0xff]
    %v971 = vld [vmem:[%s4 + $0x28] sm:$0xff]
    %v972 = vld [vmem:[%s4 + $0x30] sm:$0x3]
    %974 = vset.pattern.permute.xlu0 0
    %975 = vperm.xlu0 %974, %v966
    %v976 = vpop.permute.xlu0 %975
    %979 = vset.pattern.permute.xlu0 0
    %980 = vperm.xlu0 %979, %v967
    %v981 = vpop.permute.xlu0 %980
    %984 = vset.pattern.permute.xlu0 0
    %985 = vperm.xlu0 %984, %v968
    %v986 = vpop.permute.xlu0 %985
    %989 = vset.pattern.permute.xlu0 0
    %990 = vperm.xlu0 %989, %v969
    %v991 = vpop.permute.xlu0 %990
    %994 = vset.pattern.permute.xlu0 0
    %995 = vperm.xlu0 %994, %v970
    %v996 = vpop.permute.xlu0 %995
    %999 = vset.pattern.permute.xlu0 0
    %1000 = vperm.xlu0 %999, %v971
    %v1001 = vpop.permute.xlu0 %1000
    %1004 = vset.pattern.permute.xlu0 0
    %1005 = vperm.xlu0 %1004, %v972
    %v1006 = vpop.permute.xlu0 %1005
    %vm1008 = vcmask 408576
    %v1010 = vsel %vm1008, %v959, 0
    %v1013 = vsel %vm1008, %v960, 0
    %v1016 = vsel %vm1008, %v961, 0
    %v1019 = vsel %vm1008, %v962, 0
    %v1022 = vsel %vm1008, %v963, 0
    %v1025 = vsel %vm1008, %v964, 0
    %v1028 = vsel %vm1008, %v965, 0
    %vm1030 = vcmask 1041408
    %v1032 = vsel %vm1030, %v958, 0
    %1034 = vmatprep.subr.mxu0 0.0
    %1035 = vmatpush1.msra.mxu0 %v340
    %1036 = vmatprep.subr.mxu0 0.0
    %1037 = vmatpush1.msra.mxu0 %v443
    %1038 = vmatprep.subr.mxu0 0.0
    %1039 = vmatpush1.msra.mxu0 %v546
    %1040 = vmatprep.subr.mxu0 0.0
    %1041 = vmatpush1.msra.mxu0 %v649
    %1042 = vmatprep.subr.mxu0 0.0
    %1043 = vmatpush1.msra.mxu0 %v752
    %1044 = vmatprep.subr.mxu0 0.0
    %1045 = vmatpush1.msra.mxu0 %v855
    %1046 = vmatprep.subr.mxu0 0.0
    %1047 = vmatpush1.msra.mxu0 %v1032
    %1048 = vmatprep.subr.mxu0 0.0
    %1049 = vmatpush1.msra.mxu0 0.0
    %1050 = vmatprep.subr.mxu0 0.0
    %1051 = vmatpush1.msra.mxu0 0.0
    %1052 = vmatprep.subr.mxu0 0.0
    %1053 = vmatpush1.msra.mxu0 0.0
    %1054 = vmatprep.subr.mxu0 0.0
    %1055 = vmatpush1.msra.mxu0 0.0
    %1056 = vmatprep.subr.mxu0 0.0
    %1057 = vmatpush1.msra.mxu0 0.0
    %1058 = vmatprep.subr.mxu0 0.0
    %1059 = vmatpush1.msra.mxu0 0.0
    %1060 = vmatprep.subr.mxu0 0.0
    %1061 = vmatpush1.msra.mxu0 0.0
    %1062 = vmatprep.subr.mxu0 0.0
    %1063 = vmatpush1.msra.mxu0 0.0
    %1064 = vmatprep.subr.mxu0 0.0
    %1065 = vmatpush1.msra.mxu0 0.0
    %1066 = vmatprep.subr.mxu0 0.0
    %1067 = vmatpush1.msra.mxu0 0.0
    %1068 = vmatprep.subr.mxu0 0.0
    %1069 = vmatpush1.msra.mxu0 0.0
    %1070 = vmatprep.subr.mxu0 0.0
    %1071 = vmatpush1.msra.mxu0 0.0
    %1072 = vmatprep.subr.mxu0 0.0
    %1073 = vmatpush1.msra.mxu0 0.0
    %1074 = vmatprep.subr.mxu0 0.0
    %1075 = vmatpush1.msra.mxu0 0.0
    %1076 = vmatprep.subr.mxu0 0.0
    %1077 = vmatpush1.msra.mxu0 0.0
    %1078 = vmatprep.subr.mxu0 0.0
    %1079 = vmatpush1.msra.mxu0 0.0
    %1080 = vmatprep.subr.mxu0 0.0
    %1081 = vmatpush1.msra.mxu0 0.0
    %1082 = vmatprep.subr.mxu0 0.0
    %1083 = vmatpush1.msra.mxu0 0.0
    %1084 = vmatprep.subr.mxu0 0.0
    %1085 = vmatpush1.msra.mxu0 0.0
    %1086 = vmatprep.subr.mxu0 0.0
    %1087 = vmatpush1.msra.mxu0 0.0
    %1088 = vmatprep.subr.mxu0 0.0
    %1089 = vmatpush1.msra.mxu0 0.0
    %1090 = vmatprep.subr.mxu0 0.0
    %1091 = vmatpush1.msra.mxu0 0.0
    %1092 = vmatprep.subr.mxu0 0.0
    %1093 = vmatpush1.msra.mxu0 0.0
    %1094 = vmatprep.subr.mxu0 0.0
    %1095 = vmatpush1.msra.mxu0 0.0
    %1096 = vmatprep.subr.mxu0 0.0
    %1097 = vmatpush1.msra.mxu0 0.0
    %1098 = vmatprep.mubr.f32.mxu0 0.0
    %1099 = vmatmul.mubr.f32.gmra.mrb[0].mxu0 %v1010
    %v1100 = vpop.f32.mrb[0].mxu0
    %v1101 = vadd.f32 %v976, %v1100
    %v1102 = vpop.f32.mrb[0].mxu0
    %1103 = vmatprep.mubr.f32.mxu0 0.0
    %1104 = vmatmul.mubr.f32.gmra.mrb[0].mxu0 %v1013
    %v1105 = vpop.f32.mrb[0].mxu0
    %v1106 = vadd.f32 %v981, %v1105
    %v1107 = vpop.f32.mrb[0].mxu0
    %1108 = vmatprep.mubr.f32.mxu0 0.0
    %1109 = vmatmul.mubr.f32.gmra.mrb[0].mxu0 %v1016
    %v1110 = vpop.f32.mrb[0].mxu0
    %v1111 = vadd.f32 %v986, %v1110
    %v1112 = vpop.f32.mrb[0].mxu0
    %1113 = vmatprep.mubr.f32.mxu0 0.0
    %1114 = vmatmul.mubr.f32.gmra.mrb[0].mxu0 %v1019
    %v1115 = vpop.f32.mrb[0].mxu0
    %v1116 = vadd.f32 %v991, %v1115
    %v1117 = vpop.f32.mrb[0].mxu0
    %1118 = vmatprep.mubr.f32.mxu0 0.0
    %1119 = vmatmul.mubr.f32.gmra.mrb[0].mxu0 %v1022
    %v1120 = vpop.f32.mrb[0].mxu0
    %v1121 = vadd.f32 %v996, %v1120
    %v1122 = vpop.f32.mrb[0].mxu0
    %1123 = vmatprep.mubr.f32.mxu0 0.0
    %1124 = vmatmul.mubr.f32.gmra.mrb[0].mxu0 %v1025
    %v1125 = vpop.f32.mrb[0].mxu0
    %v1126 = vadd.f32 %v1001, %v1125
    %v1127 = vpop.f32.mrb[0].mxu0
    %1128 = vmatprep.mubr.f32.mxu0 0.0
    %1129 = vmatmul.mubr.f32.gmra.mrb[0].mxu0 %v1028
    %v1130 = vpop.f32.mrb[0].mxu0
    %v1131 = vadd.f32 %v1006, %v1130
    %v1132 = vpop.f32.mrb[0].mxu0
    %1133 = vdwg.mxu0
    %v1134 = vand.u32 2147483647, %v1101
    %vm1135 = vcmp.le.f32.partialorder %v1134, 0.7853982
    %vm1136 = vcmp.lt.s32.totalorder %v1101, 0
    %v1137 = vand.u32 %v1101, 2139095040
    %v1138 = vshrl.u32 %v1137, 23
    %v1139 = vsub.s32 %v1138, 127
    %v1140 = vand.u32 2147483647, %v1101
    %v1141 = vand.u32 %v1140, 8388607
    %v1142 = vor.u32 %v1141, 8388608
    %v1143 = vsub.s32 0, %v1142
    %v1144 = vadd.s32 %v1139, 1
    %vm1145 = vcmp.gt.s32.totalorder %v1144, 0
    %v1146 = vsel %vm1145, %v1144, 0
    %v1147 = vshrl.u32 %v1146, 5
    %v1148 = vand.u32 %v1146, 31
    %v1149 = vsub.s32 32, %v1148
    %v1150 = vshrl.u32 683565275, %v1149
    %v1151 = vshll.u32 683565275, %v1148
    %v1152 = vshrl.u32 2475754826, %v1149
    %v1153 = vor.u32 %v1151, %v1152
    %v1154 = vshll.u32 2475754826, %v1148
    %v1155 = vshrl.u32 2131351028, %v1149
    %v1156 = vor.u32 %v1154, %v1155
    %v1157 = vshll.u32 2131351028, %v1148
    %v1158 = vshrl.u32 2102212464, %v1149
    %v1159 = vor.u32 %v1157, %v1158
    %v1160 = vshll.u32 2102212464, %v1148
    %v1161 = vshrl.u32 920167782, %v1149
    %v1162 = vor.u32 %v1160, %v1161
    %v1163 = vshll.u32 920167782, %v1148
    %v1164 = vshrl.u32 1326507024, %v1149
    %v1165 = vor.u32 %v1163, %v1164
    %vm1166 = vcmp.lt.s32.totalorder %v1147, 1
    %vm1167 = vcmp.lt.s32.totalorder %v1147, 2
    %vm1168 = vcmp.lt.s32.totalorder %v1147, 3
    %vm1169 = vcmp.lt.s32.totalorder %v1147, 4
    %v1170 = vsel %vm1166, %v1150, %v1153
    %v1171 = vsel %vm1169, %v1159, 2102212464
    %v1172 = vsel %vm1168, %v1156, %v1171
    %v1173 = vsel %vm1167, %v1170, %v1172
    %v1174 = vsel %vm1166, %v1153, %v1156
    %v1175 = vsel %vm1169, %v1162, 920167782
    %v1176 = vsel %vm1168, %v1159, %v1175
    %v1177 = vsel %vm1167, %v1174, %v1176
    %v1178 = vsel %vm1166, %v1156, %v1159
    %v1179 = vsel %vm1169, %v1165, 1326507024
    %v1180 = vsel %vm1168, %v1162, %v1179
    %v1181 = vsel %vm1167, %v1178, %v1180
    %v1182 = vshll.u32 %v1142, 8
    %v1183 = vmul.u32.u64.compose %v1182, %v1181
    %v1184 = vextract.low.u32 %v1183
    %v1185 = vextract.high.u32 %v1183
    %v1186 = vmul.u32.u64.compose %v1182, %v1177
    %v1187 = vextract.low.u32 %v1186
    %v1188 = vextract.high.u32 %v1186
    %v1189 = vmul.u32 %v1182, %v1173
    %v1190 = vadd.s32 %v1185, %v1187
    %vm1191 = vc.u32 %v1185, %v1187
    %v1192 = vadd.s32 %v1188, 1
    %v1193 = vsel %vm1191, %v1192, %v1188
    %v1194 = vadd.s32 %v1189, %v1193
    %v1195 = vadd.s32 %v1194, 536870912
    %v1196 = vshrl.u32 %v1195, 30
    %v1197 = vshll.u32 %v1196, 30
    %v1198 = vsub.s32 %v1194, %v1197
    %vm1199 = vcmp.lt.s32.totalorder %v1198, 0
    %v1200 = vsub.s32 0, %v1198
    %v1201 = vsel %vm1199, %v1200, %v1198
    %v1202 = vclz %v1201
    %v1203 = vsub.s32 %v1202, 2
    %vm1204 = vcmp.gt.s32.totalorder 0, %v1203
    %v1205 = vsel %vm1204, 0, %v1203
    %v1206 = vsub.s32 32, %v1205
    %v1207 = vshll.u32 %v1198, %v1205
    %v1208 = vshrl.u32 %v1190, %v1206
    %v1209 = vor.u32 %v1207, %v1208
    %v1210 = vsub.s32 4294967266, %v1205
    %v1211 = vadd.s32 %v1210, 127
    %v1212 = vshll.u32 %v1211, 23
    %v1213 = vor.u32 4788187, %v1212
    %v1214 = vand.u32 2147483647, %v1213
    %v1216 = vcvt.s32.f32 %v1209
    %v1217 = vmul.f32 %v1216, %v1214
    %v1218 = vxor.u32 %v1217, 2147483648
    %v1219 = vsel %vm1136, %v1218, %v1217
    %v1220 = vsub.s32 4, %v1196
    %v1221 = vsel %vm1136, %v1220, %v1196
    %v1222 = vsel %vm1135, %v1101, %v1219
    %v1223 = vsel %vm1135, 0, %v1221
    %v1224 = vcosq.f32.pop %v1222
    %v1225 = vsinq.f32.pop %v1222
    %vm1226 = vweird.f32 %v1101
    %v1227 = vand.u32 %v1223, 3
    %vm1228 = vcmp.lt.s32.totalorder %v1227, 2
    %vm1229 = vcmp.eq.s32.totalorder %v1227, 0
    %v1230 = vxor.u32 %v1225, 2147483648
    %v1231 = vsel %vm1229, %v1224, %v1230
    %vm1232 = vcmp.eq.s32.totalorder %v1227, 2
    %v1233 = vxor.u32 %v1224, 2147483648
    %v1234 = vsel %vm1232, %v1233, %v1225
    %v1235 = vsel %vm1228, %v1231, %v1234
    %v1236 = vsel %vm1226, nan, %v1235
    %v1237 = vand.u32 2147483647, %v1106
    %vm1238 = vcmp.le.f32.partialorder %v1237, 0.7853982
    %vm1239 = vcmp.lt.s32.totalorder %v1106, 0
    %v1240 = vand.u32 %v1106, 2139095040
    %v1241 = vshrl.u32 %v1240, 23
    %v1242 = vsub.s32 %v1241, 127
    %v1243 = vand.u32 2147483647, %v1106
    %v1244 = vand.u32 %v1243, 8388607
    %v1245 = vor.u32 %v1244, 8388608
    %v1246 = vsub.s32 0, %v1245
    %v1247 = vadd.s32 %v1242, 1
    %vm1248 = vcmp.gt.s32.totalorder %v1247, 0
    %v1249 = vsel %vm1248, %v1247, 0
    %v1250 = vshrl.u32 %v1249, 5
    %v1251 = vand.u32 %v1249, 31
    %v1252 = vsub.s32 32, %v1251
    %v1253 = vshrl.u32 683565275, %v1252
    %v1254 = vshll.u32 683565275, %v1251
    %v1255 = vshrl.u32 2475754826, %v1252
    %v1256 = vor.u32 %v1254, %v1255
    %v1257 = vshll.u32 2475754826, %v1251
    %v1258 = vshrl.u32 2131351028, %v1252
    %v1259 = vor.u32 %v1257, %v1258
    %v1260 = vshll.u32 2131351028, %v1251
    %v1261 = vshrl.u32 2102212464, %v1252
    %v1262 = vor.u32 %v1260, %v1261
    %v1263 = vshll.u32 2102212464, %v1251
    %v1264 = vshrl.u32 920167782, %v1252
    %v1265 = vor.u32 %v1263, %v1264
    %v1266 = vshll.u32 920167782, %v1251
    %v1267 = vshrl.u32 1326507024, %v1252
    %v1268 = vor.u32 %v1266, %v1267
    %vm1269 = vcmp.lt.s32.totalorder %v1250, 1
    %vm1270 = vcmp.lt.s32.totalorder %v1250, 2
    %vm1271 = vcmp.lt.s32.totalorder %v1250, 3
    %vm1272 = vcmp.lt.s32.totalorder %v1250, 4
    %v1273 = vsel %vm1269, %v1253, %v1256
    %v1274 = vsel %vm1272, %v1262, 2102212464
    %v1275 = vsel %vm1271, %v1259, %v1274
    %v1276 = vsel %vm1270, %v1273, %v1275
    %v1277 = vsel %vm1269, %v1256, %v1259
    %v1278 = vsel %vm1272, %v1265, 920167782
    %v1279 = vsel %vm1271, %v1262, %v1278
    %v1280 = vsel %vm1270, %v1277, %v1279
    %v1281 = vsel %vm1269, %v1259, %v1262
    %v1282 = vsel %vm1272, %v1268, 1326507024
    %v1283 = vsel %vm1271, %v1265, %v1282
    %v1284 = vsel %vm1270, %v1281, %v1283
    %v1285 = vshll.u32 %v1245, 8
    %v1286 = vmul.u32.u64.compose %v1285, %v1284
    %v1287 = vextract.low.u32 %v1286
    %v1288 = vextract.high.u32 %v1286
    %v1289 = vmul.u32.u64.compose %v1285, %v1280
    %v1290 = vextract.low.u32 %v1289
    %v1291 = vextract.high.u32 %v1289
    %v1292 = vmul.u32 %v1285, %v1276
    %v1293 = vadd.s32 %v1288, %v1290
    %vm1294 = vc.u32 %v1288, %v1290
    %v1295 = vadd.s32 %v1291, 1
    %v1296 = vsel %vm1294, %v1295, %v1291
    %v1297 = vadd.s32 %v1292, %v1296
    %v1298 = vadd.s32 %v1297, 536870912
    %v1299 = vshrl.u32 %v1298, 30
    %v1300 = vshll.u32 %v1299, 30
    %v1301 = vsub.s32 %v1297, %v1300
    %vm1302 = vcmp.lt.s32.totalorder %v1301, 0
    %v1303 = vsub.s32 0, %v1301
    %v1304 = vsel %vm1302, %v1303, %v1301
    %v1305 = vclz %v1304
    %v1306 = vsub.s32 %v1305, 2
    %vm1307 = vcmp.gt.s32.totalorder 0, %v1306
    %v1308 = vsel %vm1307, 0, %v1306
    %v1309 = vsub.s32 32, %v1308
    %v1310 = vshll.u32 %v1301, %v1308
    %v1311 = vshrl.u32 %v1293, %v1309
    %v1312 = vor.u32 %v1310, %v1311
    %v1313 = vsub.s32 4294967266, %v1308
    %v1314 = vadd.s32 %v1313, 127
    %v1315 = vshll.u32 %v1314, 23
    %v1316 = vor.u32 4788187, %v1315
    %v1317 = vand.u32 2147483647, %v1316
    %v1319 = vcvt.s32.f32 %v1312
    %v1320 = vmul.f32 %v1319, %v1317
    %v1321 = vxor.u32 %v1320, 2147483648
    %v1322 = vsel %vm1239, %v1321, %v1320
    %v1323 = vsub.s32 4, %v1299
    %v1324 = vsel %vm1239, %v1323, %v1299
    %v1325 = vsel %vm1238, %v1106, %v1322
    %v1326 = vsel %vm1238, 0, %v1324
    %v1327 = vcosq.f32.pop %v1325
    %v1328 = vsinq.f32.pop %v1325
    %vm1329 = vweird.f32 %v1106
    %v1330 = vand.u32 %v1326, 3
    %vm1331 = vcmp.lt.s32.totalorder %v1330, 2
    %vm1332 = vcmp.eq.s32.totalorder %v1330, 0
    %v1333 = vxor.u32 %v1328, 2147483648
    %v1334 = vsel %vm1332, %v1327, %v1333
    %vm1335 = vcmp.eq.s32.totalorder %v1330, 2
    %v1336 = vxor.u32 %v1327, 2147483648
    %v1337 = vsel %vm1335, %v1336, %v1328
    %v1338 = vsel %vm1331, %v1334, %v1337
    %v1339 = vsel %vm1329, nan, %v1338
    %v1340 = vand.u32 2147483647, %v1111
    %vm1341 = vcmp.le.f32.partialorder %v1340, 0.7853982
    %vm1342 = vcmp.lt.s32.totalorder %v1111, 0
    %v1343 = vand.u32 %v1111, 2139095040
    %v1344 = vshrl.u32 %v1343, 23
    %v1345 = vsub.s32 %v1344, 127
    %v1346 = vand.u32 2147483647, %v1111
    %v1347 = vand.u32 %v1346, 8388607
    %v1348 = vor.u32 %v1347, 8388608
    %v1349 = vsub.s32 0, %v1348
    %v1350 = vadd.s32 %v1345, 1
    %vm1351 = vcmp.gt.s32.totalorder %v1350, 0
    %v1352 = vsel %vm1351, %v1350, 0
    %v1353 = vshrl.u32 %v1352, 5
    %v1354 = vand.u32 %v1352, 31
    %v1355 = vsub.s32 32, %v1354
    %v1356 = vshrl.u32 683565275, %v1355
    %v1357 = vshll.u32 683565275, %v1354
    %v1358 = vshrl.u32 2475754826, %v1355
    %v1359 = vor.u32 %v1357, %v1358
    %v1360 = vshll.u32 2475754826, %v1354
    %v1361 = vshrl.u32 2131351028, %v1355
    %v1362 = vor.u32 %v1360, %v1361
    %v1363 = vshll.u32 2131351028, %v1354
    %v1364 = vshrl.u32 2102212464, %v1355
    %v1365 = vor.u32 %v1363, %v1364
    %v1366 = vshll.u32 2102212464, %v1354
    %v1367 = vshrl.u32 920167782, %v1355
    %v1368 = vor.u32 %v1366, %v1367
    %v1369 = vshll.u32 920167782, %v1354
    %v1370 = vshrl.u32 1326507024, %v1355
    %v1371 = vor.u32 %v1369, %v1370
    %vm1372 = vcmp.lt.s32.totalorder %v1353, 1
    %vm1373 = vcmp.lt.s32.totalorder %v1353, 2
    %vm1374 = vcmp.lt.s32.totalorder %v1353, 3
    %vm1375 = vcmp.lt.s32.totalorder %v1353, 4
    %v1376 = vsel %vm1372, %v1356, %v1359
    %v1377 = vsel %vm1375, %v1365, 2102212464
    %v1378 = vsel %vm1374, %v1362, %v1377
    %v1379 = vsel %vm1373, %v1376, %v1378
    %v1380 = vsel %vm1372, %v1359, %v1362
    %v1381 = vsel %vm1375, %v1368, 920167782
    %v1382 = vsel %vm1374, %v1365, %v1381
    %v1383 = vsel %vm1373, %v1380, %v1382
    %v1384 = vsel %vm1372, %v1362, %v1365
    %v1385 = vsel %vm1375, %v1371, 1326507024
    %v1386 = vsel %vm1374, %v1368, %v1385
    %v1387 = vsel %vm1373, %v1384, %v1386
    %v1388 = vshll.u32 %v1348, 8
    %v1389 = vmul.u32.u64.compose %v1388, %v1387
    %v1390 = vextract.low.u32 %v1389
    %v1391 = vextract.high.u32 %v1389
    %v1392 = vmul.u32.u64.compose %v1388, %v1383
    %v1393 = vextract.low.u32 %v1392
    %v1394 = vextract.high.u32 %v1392
    %v1395 = vmul.u32 %v1388, %v1379
    %v1396 = vadd.s32 %v1391, %v1393
    %vm1397 = vc.u32 %v1391, %v1393
    %v1398 = vadd.s32 %v1394, 1
    %v1399 = vsel %vm1397, %v1398, %v1394
    %v1400 = vadd.s32 %v1395, %v1399
    %v1401 = vadd.s32 %v1400, 536870912
    %v1402 = vshrl.u32 %v1401, 30
    %v1403 = vshll.u32 %v1402, 30
    %v1404 = vsub.s32 %v1400, %v1403
    %vm1405 = vcmp.lt.s32.totalorder %v1404, 0
    %v1406 = vsub.s32 0, %v1404
    %v1407 = vsel %vm1405, %v1406, %v1404
    %v1408 = vclz %v1407
    %v1409 = vsub.s32 %v1408, 2
    %vm1410 = vcmp.gt.s32.totalorder 0, %v1409
    %v1411 = vsel %vm1410, 0, %v1409
    %v1412 = vsub.s32 32, %v1411
    %v1413 = vshll.u32 %v1404, %v1411
    %v1414 = vshrl.u32 %v1396, %v1412
    %v1415 = vor.u32 %v1413, %v1414
    %v1416 = vsub.s32 4294967266, %v1411
    %v1417 = vadd.s32 %v1416, 127
    %v1418 = vshll.u32 %v1417, 23
    %v1419 = vor.u32 4788187, %v1418
    %v1420 = vand.u32 2147483647, %v1419
    %v1422 = vcvt.s32.f32 %v1415
    %v1423 = vmul.f32 %v1422, %v1420
    %v1424 = vxor.u32 %v1423, 2147483648
    %v1425 = vsel %vm1342, %v1424, %v1423
    %v1426 = vsub.s32 4, %v1402
    %v1427 = vsel %vm1342, %v1426, %v1402
    %v1428 = vsel %vm1341, %v1111, %v1425
    %v1429 = vsel %vm1341, 0, %v1427
    %v1430 = vcosq.f32.pop %v1428
    %v1431 = vsinq.f32.pop %v1428
    %vm1432 = vweird.f32 %v1111
    %v1433 = vand.u32 %v1429, 3
    %vm1434 = vcmp.lt.s32.totalorder %v1433, 2
    %vm1435 = vcmp.eq.s32.totalorder %v1433, 0
    %v1436 = vxor.u32 %v1431, 2147483648
    %v1437 = vsel %vm1435, %v1430, %v1436
    %vm1438 = vcmp.eq.s32.totalorder %v1433, 2
    %v1439 = vxor.u32 %v1430, 2147483648
    %v1440 = vsel %vm1438, %v1439, %v1431
    %v1441 = vsel %vm1434, %v1437, %v1440
    %v1442 = vsel %vm1432, nan, %v1441
    %v1443 = vand.u32 2147483647, %v1116
    %vm1444 = vcmp.le.f32.partialorder %v1443, 0.7853982
    %vm1445 = vcmp.lt.s32.totalorder %v1116, 0
    %v1446 = vand.u32 %v1116, 2139095040
    %v1447 = vshrl.u32 %v1446, 23
    %v1448 = vsub.s32 %v1447, 127
    %v1449 = vand.u32 2147483647, %v1116
    %v1450 = vand.u32 %v1449, 8388607
    %v1451 = vor.u32 %v1450, 8388608
    %v1452 = vsub.s32 0, %v1451
    %v1453 = vadd.s32 %v1448, 1
    %vm1454 = vcmp.gt.s32.totalorder %v1453, 0
    %v1455 = vsel %vm1454, %v1453, 0
    %v1456 = vshrl.u32 %v1455, 5
    %v1457 = vand.u32 %v1455, 31
    %v1458 = vsub.s32 32, %v1457
    %v1459 = vshrl.u32 683565275, %v1458
    %v1460 = vshll.u32 683565275, %v1457
    %v1461 = vshrl.u32 2475754826, %v1458
    %v1462 = vor.u32 %v1460, %v1461
    %v1463 = vshll.u32 2475754826, %v1457
    %v1464 = vshrl.u32 2131351028, %v1458
    %v1465 = vor.u32 %v1463, %v1464
    %v1466 = vshll.u32 2131351028, %v1457
    %v1467 = vshrl.u32 2102212464, %v1458
    %v1468 = vor.u32 %v1466, %v1467
    %v1469 = vshll.u32 2102212464, %v1457
    %v1470 = vshrl.u32 920167782, %v1458
    %v1471 = vor.u32 %v1469, %v1470
    %v1472 = vshll.u32 920167782, %v1457
    %v1473 = vshrl.u32 1326507024, %v1458
    %v1474 = vor.u32 %v1472, %v1473
    %vm1475 = vcmp.lt.s32.totalorder %v1456, 1
    %vm1476 = vcmp.lt.s32.totalorder %v1456, 2
    %vm1477 = vcmp.lt.s32.totalorder %v1456, 3
    %vm1478 = vcmp.lt.s32.totalorder %v1456, 4
    %v1479 = vsel %vm1475, %v1459, %v1462
    %v1480 = vsel %vm1478, %v1468, 2102212464
    %v1481 = vsel %vm1477, %v1465, %v1480
    %v1482 = vsel %vm1476, %v1479, %v1481
    %v1483 = vsel %vm1475, %v1462, %v1465
    %v1484 = vsel %vm1478, %v1471, 920167782
    %v1485 = vsel %vm1477, %v1468, %v1484
    %v1486 = vsel %vm1476, %v1483, %v1485
    %v1487 = vsel %vm1475, %v1465, %v1468
    %v1488 = vsel %vm1478, %v1474, 1326507024
    %v1489 = vsel %vm1477, %v1471, %v1488
    %v1490 = vsel %vm1476, %v1487, %v1489
    %v1491 = vshll.u32 %v1451, 8
    %v1492 = vmul.u32.u64.compose %v1491, %v1490
    %v1493 = vextract.low.u32 %v1492
    %v1494 = vextract.high.u32 %v1492
    %v1495 = vmul.u32.u64.compose %v1491, %v1486
    %v1496 = vextract.low.u32 %v1495
    %v1497 = vextract.high.u32 %v1495
    %v1498 = vmul.u32 %v1491, %v1482
    %v1499 = vadd.s32 %v1494, %v1496
    %vm1500 = vc.u32 %v1494, %v1496
    %v1501 = vadd.s32 %v1497, 1
    %v1502 = vsel %vm1500, %v1501, %v1497
    %v1503 = vadd.s32 %v1498, %v1502
    %v1504 = vadd.s32 %v1503, 536870912
    %v1505 = vshrl.u32 %v1504, 30
    %v1506 = vshll.u32 %v1505, 30
    %v1507 = vsub.s32 %v1503, %v1506
    %vm1508 = vcmp.lt.s32.totalorder %v1507, 0
    %v1509 = vsub.s32 0, %v1507
    %v1510 = vsel %vm1508, %v1509, %v1507
    %v1511 = vclz %v1510
    %v1512 = vsub.s32 %v1511, 2
    %vm1513 = vcmp.gt.s32.totalorder 0, %v1512
    %v1514 = vsel %vm1513, 0, %v1512
    %v1515 = vsub.s32 32, %v1514
    %v1516 = vshll.u32 %v1507, %v1514
    %v1517 = vshrl.u32 %v1499, %v1515
    %v1518 = vor.u32 %v1516, %v1517
    %v1519 = vsub.s32 4294967266, %v1514
    %v1520 = vadd.s32 %v1519, 127
    %v1521 = vshll.u32 %v1520, 23
    %v1522 = vor.u32 4788187, %v1521
    %v1523 = vand.u32 2147483647, %v1522
    %v1525 = vcvt.s32.f32 %v1518
    %v1526 = vmul.f32 %v1525, %v1523
    %v1527 = vxor.u32 %v1526, 2147483648
    %v1528 = vsel %vm1445, %v1527, %v1526
    %v1529 = vsub.s32 4, %v1505
    %v1530 = vsel %vm1445, %v1529, %v1505
    %v1531 = vsel %vm1444, %v1116, %v1528
    %v1532 = vsel %vm1444, 0, %v1530
    %v1533 = vcosq.f32.pop %v1531
    %v1534 = vsinq.f32.pop %v1531
    %vm1535 = vweird.f32 %v1116
    %v1536 = vand.u32 %v1532, 3
    %vm1537 = vcmp.lt.s32.totalorder %v1536, 2
    %vm1538 = vcmp.eq.s32.totalorder %v1536, 0
    %v1539 = vxor.u32 %v1534, 2147483648
    %v1540 = vsel %vm1538, %v1533, %v1539
    %vm1541 = vcmp.eq.s32.totalorder %v1536, 2
    %v1542 = vxor.u32 %v1533, 2147483648
    %v1543 = vsel %vm1541, %v1542, %v1534
    %v1544 = vsel %vm1537, %v1540, %v1543
    %v1545 = vsel %vm1535, nan, %v1544
    %v1546 = vand.u32 2147483647, %v1121
    %vm1547 = vcmp.le.f32.partialorder %v1546, 0.7853982
    %vm1548 = vcmp.lt.s32.totalorder %v1121, 0
    %v1549 = vand.u32 %v1121, 2139095040
    %v1550 = vshrl.u32 %v1549, 23
    %v1551 = vsub.s32 %v1550, 127
    %v1552 = vand.u32 2147483647, %v1121
    %v1553 = vand.u32 %v1552, 8388607
    %v1554 = vor.u32 %v1553, 8388608
    %v1555 = vsub.s32 0, %v1554
    %v1556 = vadd.s32 %v1551, 1
    %vm1557 = vcmp.gt.s32.totalorder %v1556, 0
    %v1558 = vsel %vm1557, %v1556, 0
    %v1559 = vshrl.u32 %v1558, 5
    %v1560 = vand.u32 %v1558, 31
    %v1561 = vsub.s32 32, %v1560
    %v1562 = vshrl.u32 683565275, %v1561
    %v1563 = vshll.u32 683565275, %v1560
    %v1564 = vshrl.u32 2475754826, %v1561
    %v1565 = vor.u32 %v1563, %v1564
    %v1566 = vshll.u32 2475754826, %v1560
    %v1567 = vshrl.u32 2131351028, %v1561
    %v1568 = vor.u32 %v1566, %v1567
    %v1569 = vshll.u32 2131351028, %v1560
    %v1570 = vshrl.u32 2102212464, %v1561
    %v1571 = vor.u32 %v1569, %v1570
    %v1572 = vshll.u32 2102212464, %v1560
    %v1573 = vshrl.u32 920167782, %v1561
    %v1574 = vor.u32 %v1572, %v1573
    %v1575 = vshll.u32 920167782, %v1560
    %v1576 = vshrl.u32 1326507024, %v1561
    %v1577 = vor.u32 %v1575, %v1576
    %vm1578 = vcmp.lt.s32.totalorder %v1559, 1
    %vm1579 = vcmp.lt.s32.totalorder %v1559, 2
    %vm1580 = vcmp.lt.s32.totalorder %v1559, 3
    %vm1581 = vcmp.lt.s32.totalorder %v1559, 4
    %v1582 = vsel %vm1578, %v1562, %v1565
    %v1583 = vsel %vm1581, %v1571, 2102212464
    %v1584 = vsel %vm1580, %v1568, %v1583
    %v1585 = vsel %vm1579, %v1582, %v1584
    %v1586 = vsel %vm1578, %v1565, %v1568
    %v1587 = vsel %vm1581, %v1574, 920167782
    %v1588 = vsel %vm1580, %v1571, %v1587
    %v1589 = vsel %vm1579, %v1586, %v1588
    %v1590 = vsel %vm1578, %v1568, %v1571
    %v1591 = vsel %vm1581, %v1577, 1326507024
    %v1592 = vsel %vm1580, %v1574, %v1591
    %v1593 = vsel %vm1579, %v1590, %v1592
    %v1594 = vshll.u32 %v1554, 8
    %v1595 = vmul.u32.u64.compose %v1594, %v1593
    %v1596 = vextract.low.u32 %v1595
    %v1597 = vextract.high.u32 %v1595
    %v1598 = vmul.u32.u64.compose %v1594, %v1589
    %v1599 = vextract.low.u32 %v1598
    %v1600 = vextract.high.u32 %v1598
    %v1601 = vmul.u32 %v1594, %v1585
    %v1602 = vadd.s32 %v1597, %v1599
    %vm1603 = vc.u32 %v1597, %v1599
    %v1604 = vadd.s32 %v1600, 1
    %v1605 = vsel %vm1603, %v1604, %v1600
    %v1606 = vadd.s32 %v1601, %v1605
    %v1607 = vadd.s32 %v1606, 536870912
    %v1608 = vshrl.u32 %v1607, 30
    %v1609 = vshll.u32 %v1608, 30
    %v1610 = vsub.s32 %v1606, %v1609
    %vm1611 = vcmp.lt.s32.totalorder %v1610, 0
    %v1612 = vsub.s32 0, %v1610
    %v1613 = vsel %vm1611, %v1612, %v1610
    %v1614 = vclz %v1613
    %v1615 = vsub.s32 %v1614, 2
    %vm1616 = vcmp.gt.s32.totalorder 0, %v1615
    %v1617 = vsel %vm1616, 0, %v1615
    %v1618 = vsub.s32 32, %v1617
    %v1619 = vshll.u32 %v1610, %v1617
    %v1620 = vshrl.u32 %v1602, %v1618
    %v1621 = vor.u32 %v1619, %v1620
    %v1622 = vsub.s32 4294967266, %v1617
    %v1623 = vadd.s32 %v1622, 127
    %v1624 = vshll.u32 %v1623, 23
    %v1625 = vor.u32 4788187, %v1624
    %v1626 = vand.u32 2147483647, %v1625
    %v1628 = vcvt.s32.f32 %v1621
    %v1629 = vmul.f32 %v1628, %v1626
    %v1630 = vxor.u32 %v1629, 2147483648
    %v1631 = vsel %vm1548, %v1630, %v1629
    %v1632 = vsub.s32 4, %v1608
    %v1633 = vsel %vm1548, %v1632, %v1608
    %v1634 = vsel %vm1547, %v1121, %v1631
    %v1635 = vsel %vm1547, 0, %v1633
    %v1636 = vcosq.f32.pop %v1634
    %v1637 = vsinq.f32.pop %v1634
    %vm1638 = vweird.f32 %v1121
    %v1639 = vand.u32 %v1635, 3
    %vm1640 = vcmp.lt.s32.totalorder %v1639, 2
    %vm1641 = vcmp.eq.s32.totalorder %v1639, 0
    %v1642 = vxor.u32 %v1637, 2147483648
    %v1643 = vsel %vm1641, %v1636, %v1642
    %vm1644 = vcmp.eq.s32.totalorder %v1639, 2
    %v1645 = vxor.u32 %v1636, 2147483648
    %v1646 = vsel %vm1644, %v1645, %v1637
    %v1647 = vsel %vm1640, %v1643, %v1646
    %v1648 = vsel %vm1638, nan, %v1647
    %v1649 = vand.u32 2147483647, %v1126
    %vm1650 = vcmp.le.f32.partialorder %v1649, 0.7853982
    %vm1651 = vcmp.lt.s32.totalorder %v1126, 0
    %v1652 = vand.u32 %v1126, 2139095040
    %v1653 = vshrl.u32 %v1652, 23
    %v1654 = vsub.s32 %v1653, 127
    %v1655 = vand.u32 2147483647, %v1126
    %v1656 = vand.u32 %v1655, 8388607
    %v1657 = vor.u32 %v1656, 8388608
    %v1658 = vsub.s32 0, %v1657
    %v1659 = vadd.s32 %v1654, 1
    %vm1660 = vcmp.gt.s32.totalorder %v1659, 0
    %v1661 = vsel %vm1660, %v1659, 0
    %v1662 = vshrl.u32 %v1661, 5
    %v1663 = vand.u32 %v1661, 31
    %v1664 = vsub.s32 32, %v1663
    %v1665 = vshrl.u32 683565275, %v1664
    %v1666 = vshll.u32 683565275, %v1663
    %v1667 = vshrl.u32 2475754826, %v1664
    %v1668 = vor.u32 %v1666, %v1667
    %v1669 = vshll.u32 2475754826, %v1663
    %v1670 = vshrl.u32 2131351028, %v1664
    %v1671 = vor.u32 %v1669, %v1670
    %v1672 = vshll.u32 2131351028, %v1663
    %v1673 = vshrl.u32 2102212464, %v1664
    %v1674 = vor.u32 %v1672, %v1673
    %v1675 = vshll.u32 2102212464, %v1663
    %v1676 = vshrl.u32 920167782, %v1664
    %v1677 = vor.u32 %v1675, %v1676
    %v1678 = vshll.u32 920167782, %v1663
    %v1679 = vshrl.u32 1326507024, %v1664
    %v1680 = vor.u32 %v1678, %v1679
    %vm1681 = vcmp.lt.s32.totalorder %v1662, 1
    %vm1682 = vcmp.lt.s32.totalorder %v1662, 2
    %vm1683 = vcmp.lt.s32.totalorder %v1662, 3
    %vm1684 = vcmp.lt.s32.totalorder %v1662, 4
    %v1685 = vsel %vm1681, %v1665, %v1668
    %v1686 = vsel %vm1684, %v1674, 2102212464
    %v1687 = vsel %vm1683, %v1671, %v1686
    %v1688 = vsel %vm1682, %v1685, %v1687
    %v1689 = vsel %vm1681, %v1668, %v1671
    %v1690 = vsel %vm1684, %v1677, 920167782
    %v1691 = vsel %vm1683, %v1674, %v1690
    %v1692 = vsel %vm1682, %v1689, %v1691
    %v1693 = vsel %vm1681, %v1671, %v1674
    %v1694 = vsel %vm1684, %v1680, 1326507024
    %v1695 = vsel %vm1683, %v1677, %v1694
    %v1696 = vsel %vm1682, %v1693, %v1695
    %v1697 = vshll.u32 %v1657, 8
    %v1698 = vmul.u32.u64.compose %v1697, %v1696
    %v1699 = vextract.low.u32 %v1698
    %v1700 = vextract.high.u32 %v1698
    %v1701 = vmul.u32.u64.compose %v1697, %v1692
    %v1702 = vextract.low.u32 %v1701
    %v1703 = vextract.high.u32 %v1701
    %v1704 = vmul.u32 %v1697, %v1688
    %v1705 = vadd.s32 %v1700, %v1702
    %vm1706 = vc.u32 %v1700, %v1702
    %v1707 = vadd.s32 %v1703, 1
    %v1708 = vsel %vm1706, %v1707, %v1703
    %v1709 = vadd.s32 %v1704, %v1708
    %v1710 = vadd.s32 %v1709, 536870912
    %v1711 = vshrl.u32 %v1710, 30
    %v1712 = vshll.u32 %v1711, 30
    %v1713 = vsub.s32 %v1709, %v1712
    %vm1714 = vcmp.lt.s32.totalorder %v1713, 0
    %v1715 = vsub.s32 0, %v1713
    %v1716 = vsel %vm1714, %v1715, %v1713
    %v1717 = vclz %v1716
    %v1718 = vsub.s32 %v1717, 2
    %vm1719 = vcmp.gt.s32.totalorder 0, %v1718
    %v1720 = vsel %vm1719, 0, %v1718
    %v1721 = vsub.s32 32, %v1720
    %v1722 = vshll.u32 %v1713, %v1720
    %v1723 = vshrl.u32 %v1705, %v1721
    %v1724 = vor.u32 %v1722, %v1723
    %v1725 = vsub.s32 4294967266, %v1720
    %v1726 = vadd.s32 %v1725, 127
    %v1727 = vshll.u32 %v1726, 23
    %v1728 = vor.u32 4788187, %v1727
    %v1729 = vand.u32 2147483647, %v1728
    %v1731 = vcvt.s32.f32 %v1724
    %v1732 = vmul.f32 %v1731, %v1729
    %v1733 = vxor.u32 %v1732, 2147483648
    %v1734 = vsel %vm1651, %v1733, %v1732
    %v1735 = vsub.s32 4, %v1711
    %v1736 = vsel %vm1651, %v1735, %v1711
    %v1737 = vsel %vm1650, %v1126, %v1734
    %v1738 = vsel %vm1650, 0, %v1736
    %v1739 = vcosq.f32.pop %v1737
    %v1740 = vsinq.f32.pop %v1737
    %vm1741 = vweird.f32 %v1126
    %v1742 = vand.u32 %v1738, 3
    %vm1743 = vcmp.lt.s32.totalorder %v1742, 2
    %vm1744 = vcmp.eq.s32.totalorder %v1742, 0
    %v1745 = vxor.u32 %v1740, 2147483648
    %v1746 = vsel %vm1744, %v1739, %v1745
    %vm1747 = vcmp.eq.s32.totalorder %v1742, 2
    %v1748 = vxor.u32 %v1739, 2147483648
    %v1749 = vsel %vm1747, %v1748, %v1740
    %v1750 = vsel %vm1743, %v1746, %v1749
    %v1751 = vsel %vm1741, nan, %v1750
    %v1752 = vand.u32 2147483647, %v1131
    %vm1753 = vcmp.le.f32.partialorder %v1752, 0.7853982
    %vm1754 = vcmp.lt.s32.totalorder %v1131, 0
    %v1755 = vand.u32 %v1131, 2139095040
    %v1756 = vshrl.u32 %v1755, 23
    %v1757 = vsub.s32 %v1756, 127
    %v1758 = vand.u32 2147483647, %v1131
    %v1759 = vand.u32 %v1758, 8388607
    %v1760 = vor.u32 %v1759, 8388608
    %v1761 = vsub.s32 0, %v1760
    %v1762 = vadd.s32 %v1757, 1
    %vm1763 = vcmp.gt.s32.totalorder %v1762, 0
    %v1764 = vsel %vm1763, %v1762, 0
    %v1765 = vshrl.u32 %v1764, 5
    %v1766 = vand.u32 %v1764, 31
    %v1767 = vsub.s32 32, %v1766
    %v1768 = vshrl.u32 683565275, %v1767
    %v1769 = vshll.u32 683565275, %v1766
    %v1770 = vshrl.u32 2475754826, %v1767
    %v1771 = vor.u32 %v1769, %v1770
    %v1772 = vshll.u32 2475754826, %v1766
    %v1773 = vshrl.u32 2131351028, %v1767
    %v1774 = vor.u32 %v1772, %v1773
    %v1775 = vshll.u32 2131351028, %v1766
    %v1776 = vshrl.u32 2102212464, %v1767
    %v1777 = vor.u32 %v1775, %v1776
    %v1778 = vshll.u32 2102212464, %v1766
    %v1779 = vshrl.u32 920167782, %v1767
    %v1780 = vor.u32 %v1778, %v1779
    %v1781 = vshll.u32 920167782, %v1766
    %v1782 = vshrl.u32 1326507024, %v1767
    %v1783 = vor.u32 %v1781, %v1782
    %vm1784 = vcmp.lt.s32.totalorder %v1765, 1
    %vm1785 = vcmp.lt.s32.totalorder %v1765, 2
    %vm1786 = vcmp.lt.s32.totalorder %v1765, 3
    %vm1787 = vcmp.lt.s32.totalorder %v1765, 4
    %v1788 = vsel %vm1784, %v1768, %v1771
    %v1789 = vsel %vm1787, %v1777, 2102212464
    %v1790 = vsel %vm1786, %v1774, %v1789
    %v1791 = vsel %vm1785, %v1788, %v1790
    %v1792 = vsel %vm1784, %v1771, %v1774
    %v1793 = vsel %vm1787, %v1780, 920167782
    %v1794 = vsel %vm1786, %v1777, %v1793
    %v1795 = vsel %vm1785, %v1792, %v1794
    %v1796 = vsel %vm1784, %v1774, %v1777
    %v1797 = vsel %vm1787, %v1783, 1326507024
    %v1798 = vsel %vm1786, %v1780, %v1797
    %v1799 = vsel %vm1785, %v1796, %v1798
    %v1800 = vshll.u32 %v1760, 8
    %v1801 = vmul.u32.u64.compose %v1800, %v1799
    %v1802 = vextract.low.u32 %v1801
    %v1803 = vextract.high.u32 %v1801
    %v1804 = vmul.u32.u64.compose %v1800, %v1795
    %v1805 = vextract.low.u32 %v1804
    %v1806 = vextract.high.u32 %v1804
    %v1807 = vmul.u32 %v1800, %v1791
    %v1808 = vadd.s32 %v1803, %v1805
    %vm1809 = vc.u32 %v1803, %v1805
    %v1810 = vadd.s32 %v1806, 1
    %v1811 = vsel %vm1809, %v1810, %v1806
    %v1812 = vadd.s32 %v1807, %v1811
    %v1813 = vadd.s32 %v1812, 536870912
    %v1814 = vshrl.u32 %v1813, 30
    %v1815 = vshll.u32 %v1814, 30
    %v1816 = vsub.s32 %v1812, %v1815
    %vm1817 = vcmp.lt.s32.totalorder %v1816, 0
    %v1818 = vsub.s32 0, %v1816
    %v1819 = vsel %vm1817, %v1818, %v1816
    %v1820 = vclz %v1819
    %v1821 = vsub.s32 %v1820, 2
    %vm1822 = vcmp.gt.s32.totalorder 0, %v1821
    %v1823 = vsel %vm1822, 0, %v1821
    %v1824 = vsub.s32 32, %v1823
    %v1825 = vshll.u32 %v1816, %v1823
    %v1826 = vshrl.u32 %v1808, %v1824
    %v1827 = vor.u32 %v1825, %v1826
    %v1828 = vsub.s32 4294967266, %v1823
    %v1829 = vadd.s32 %v1828, 127
    %v1830 = vshll.u32 %v1829, 23
    %v1831 = vor.u32 4788187, %v1830
    %v1832 = vand.u32 2147483647, %v1831
    %v1834 = vcvt.s32.f32 %v1827
    %v1835 = vmul.f32 %v1834, %v1832
    %v1836 = vxor.u32 %v1835, 2147483648
    %v1837 = vsel %vm1754, %v1836, %v1835
    %v1838 = vsub.s32 4, %v1814
    %v1839 = vsel %vm1754, %v1838, %v1814
    %v1840 = vsel %vm1753, %v1131, %v1837
    %v1841 = vsel %vm1753, 0, %v1839
    %v1842 = vcosq.f32.pop %v1840
    %v1843 = vsinq.f32.pop %v1840
    %vm1844 = vweird.f32 %v1131
    %v1845 = vand.u32 %v1841, 3
    %vm1846 = vcmp.lt.s32.totalorder %v1845, 2
    %vm1847 = vcmp.eq.s32.totalorder %v1845, 0
    %v1848 = vxor.u32 %v1843, 2147483648
    %v1849 = vsel %vm1847, %v1842, %v1848
    %vm1850 = vcmp.eq.s32.totalorder %v1845, 2
    %v1851 = vxor.u32 %v1842, 2147483648
    %v1852 = vsel %vm1850, %v1851, %v1843
    %v1853 = vsel %vm1846, %v1849, %v1852
    %v1854 = vsel %vm1844, nan, %v1853
    %v1855 = vld [vmem:[%s5] sm:$0x3]
    %v1856 = vld [vmem:[%s6] sm:$0x3]
    %1858 = vset.pattern.permute.xlu0 0
    %1859 = vperm.xlu0 %1858, %v1856
    %v1860 = vpop.permute.xlu0 %1859
    %v1863 = vsel %vm1008, %v1855, 0
    %v1866 = vsel %vm1030, %v1854, 0
    %1868 = vmatprep.subr.mxu0 0.0
    %1869 = vmatpush1.msra.mxu0 %v1236
    %1870 = vmatprep.subr.mxu0 0.0
    %1871 = vmatpush1.msra.mxu0 %v1339
    %1872 = vmatprep.subr.mxu0 0.0
    %1873 = vmatpush1.msra.mxu0 %v1442
    %1874 = vmatprep.subr.mxu0 0.0
    %1875 = vmatpush1.msra.mxu0 %v1545
    %1876 = vmatprep.subr.mxu0 0.0
    %1877 = vmatpush1.msra.mxu0 %v1648
    %1878 = vmatprep.subr.mxu0 0.0
    %1879 = vmatpush1.msra.mxu0 %v1751
    %1880 = vmatprep.subr.mxu0 0.0
    %1881 = vmatpush1.msra.mxu0 %v1866
    %1882 = vmatprep.subr.mxu0 0.0
    %1883 = vmatpush1.msra.mxu0 0.0
    %1884 = vmatprep.subr.mxu0 0.0
    %1885 = vmatpush1.msra.mxu0 0.0
    %1886 = vmatprep.subr.mxu0 0.0
    %1887 = vmatpush1.msra.mxu0 0.0
    %1888 = vmatprep.subr.mxu0 0.0
    %1889 = vmatpush1.msra.mxu0 0.0
    %1890 = vmatprep.subr.mxu0 0.0
    %1891 = vmatpush1.msra.mxu0 0.0
    %1892 = vmatprep.subr.mxu0 0.0
    %1893 = vmatpush1.msra.mxu0 0.0
    %1894 = vmatprep.subr.mxu0 0.0
    %1895 = vmatpush1.msra.mxu0 0.0
    %1896 = vmatprep.subr.mxu0 0.0
    %1897 = vmatpush1.msra.mxu0 0.0
    %1898 = vmatprep.subr.mxu0 0.0
    %1899 = vmatpush1.msra.mxu0 0.0
    %1900 = vmatprep.subr.mxu0 0.0
    %1901 = vmatpush1.msra.mxu0 0.0
    %1902 = vmatprep.subr.mxu0 0.0
    %1903 = vmatpush1.msra.mxu0 0.0
    %1904 = vmatprep.subr.mxu0 0.0
    %1905 = vmatpush1.msra.mxu0 0.0
    %1906 = vmatprep.subr.mxu0 0.0
    %1907 = vmatpush1.msra.mxu0 0.0
    %1908 = vmatprep.subr.mxu0 0.0
    %1909 = vmatpush1.msra.mxu0 0.0
    %1910 = vmatprep.subr.mxu0 0.0
    %1911 = vmatpush1.msra.mxu0 0.0
    %1912 = vmatprep.subr.mxu0 0.0
    %1913 = vmatpush1.msra.mxu0 0.0
    %1914 = vmatprep.subr.mxu0 0.0
    %1915 = vmatpush1.msra.mxu0 0.0
    %1916 = vmatprep.subr.mxu0 0.0
    %1917 = vmatpush1.msra.mxu0 0.0
    %1918 = vmatprep.subr.mxu0 0.0
    %1919 = vmatpush1.msra.mxu0 0.0
    %1920 = vmatprep.subr.mxu0 0.0
    %1921 = vmatpush1.msra.mxu0 0.0
    %1922 = vmatprep.subr.mxu0 0.0
    %1923 = vmatpush1.msra.mxu0 0.0
    %1924 = vmatprep.subr.mxu0 0.0
    %1925 = vmatpush1.msra.mxu0 0.0
    %1926 = vmatprep.subr.mxu0 0.0
    %1927 = vmatpush1.msra.mxu0 0.0
    %1928 = vmatprep.subr.mxu0 0.0
    %1929 = vmatpush1.msra.mxu0 0.0
    %1930 = vmatprep.subr.mxu0 0.0
    %1931 = vmatpush1.msra.mxu0 0.0
    %1932 = vmatprep.mubr.f32.mxu0 0.0
    %1933 = vmatmul.mubr.f32.gmra.mrb[0].mxu0 %v1863
    %v1934 = vpop.f32.mrb[0].mxu0
    %v1935 = vadd.f32 %v1860, %v1934
    %v1936 = vpop.f32.mrb[0].mxu0
    %1937 = vdwg.mxu0
    %v1938 = vand.u32 2147483647, %v1935
    %vm1939 = vcmp.le.f32.partialorder %v1938, 0.7853982
    %vm1940 = vcmp.lt.s32.totalorder %v1935, 0
    %v1941 = vand.u32 %v1935, 2139095040
    %v1942 = vshrl.u32 %v1941, 23
    %v1943 = vsub.s32 %v1942, 127
    %v1944 = vand.u32 2147483647, %v1935
    %v1945 = vand.u32 %v1944, 8388607
    %v1946 = vor.u32 %v1945, 8388608
    %v1947 = vsub.s32 0, %v1946
    %v1948 = vadd.s32 %v1943, 1
    %vm1949 = vcmp.gt.s32.totalorder %v1948, 0
    %v1950 = vsel %vm1949, %v1948, 0
    %v1951 = vshrl.u32 %v1950, 5
    %v1952 = vand.u32 %v1950, 31
    %v1953 = vsub.s32 32, %v1952
    %v1954 = vshrl.u32 683565275, %v1953
    %v1955 = vshll.u32 683565275, %v1952
    %v1956 = vshrl.u32 2475754826, %v1953
    %v1957 = vor.u32 %v1955, %v1956
    %v1958 = vshll.u32 2475754826, %v1952
    %v1959 = vshrl.u32 2131351028, %v1953
    %v1960 = vor.u32 %v1958, %v1959
    %v1961 = vshll.u32 2131351028, %v1952
    %v1962 = vshrl.u32 2102212464, %v1953
    %v1963 = vor.u32 %v1961, %v1962
    %v1964 = vshll.u32 2102212464, %v1952
    %v1965 = vshrl.u32 920167782, %v1953
    %v1966 = vor.u32 %v1964, %v1965
    %v1967 = vshll.u32 920167782, %v1952
    %v1968 = vshrl.u32 1326507024, %v1953
    %v1969 = vor.u32 %v1967, %v1968
    %vm1970 = vcmp.lt.s32.totalorder %v1951, 1
    %vm1971 = vcmp.lt.s32.totalorder %v1951, 2
    %vm1972 = vcmp.lt.s32.totalorder %v1951, 3
    %vm1973 = vcmp.lt.s32.totalorder %v1951, 4
    %v1974 = vsel %vm1970, %v1954, %v1957
    %v1975 = vsel %vm1973, %v1963, 2102212464
    %v1976 = vsel %vm1972, %v1960, %v1975
    %v1977 = vsel %vm1971, %v1974, %v1976
    %v1978 = vsel %vm1970, %v1957, %v1960
    %v1979 = vsel %vm1973, %v1966, 920167782
    %v1980 = vsel %vm1972, %v1963, %v1979
    %v1981 = vsel %vm1971, %v1978, %v1980
    %v1982 = vsel %vm1970, %v1960, %v1963
    %v1983 = vsel %vm1973, %v1969, 1326507024
    %v1984 = vsel %vm1972, %v1966, %v1983
    %v1985 = vsel %vm1971, %v1982, %v1984
    %v1986 = vshll.u32 %v1946, 8
    %v1987 = vmul.u32.u64.compose %v1986, %v1985
    %v1988 = vextract.low.u32 %v1987
    %v1989 = vextract.high.u32 %v1987
    %v1990 = vmul.u32.u64.compose %v1986, %v1981
    %v1991 = vextract.low.u32 %v1990
    %v1992 = vextract.high.u32 %v1990
    %v1993 = vmul.u32 %v1986, %v1977
    %v1994 = vadd.s32 %v1989, %v1991
    %vm1995 = vc.u32 %v1989, %v1991
    %v1996 = vadd.s32 %v1992, 1
    %v1997 = vsel %vm1995, %v1996, %v1992
    %v1998 = vadd.s32 %v1993, %v1997
    %v1999 = vadd.s32 %v1998, 536870912
    %v2000 = vshrl.u32 %v1999, 30
    %v2001 = vshll.u32 %v2000, 30
    %v2002 = vsub.s32 %v1998, %v2001
    %vm2003 = vcmp.lt.s32.totalorder %v2002, 0
    %v2004 = vsub.s32 0, %v2002
    %v2005 = vsel %vm2003, %v2004, %v2002
    %v2006 = vclz %v2005
    %v2007 = vsub.s32 %v2006, 2
    %vm2008 = vcmp.gt.s32.totalorder 0, %v2007
    %v2009 = vsel %vm2008, 0, %v2007
    %v2010 = vsub.s32 32, %v2009
    %v2011 = vshll.u32 %v2002, %v2009
    %v2012 = vshrl.u32 %v1994, %v2010
    %v2013 = vor.u32 %v2011, %v2012
    %v2014 = vsub.s32 4294967266, %v2009
    %v2015 = vadd.s32 %v2014, 127
    %v2016 = vshll.u32 %v2015, 23
    %v2017 = vor.u32 4788187, %v2016
    %v2018 = vand.u32 2147483647, %v2017
    %v2020 = vcvt.s32.f32 %v2013
    %v2021 = vmul.f32 %v2020, %v2018
    %v2022 = vxor.u32 %v2021, 2147483648
    %v2023 = vsel %vm1940, %v2022, %v2021
    %v2024 = vsub.s32 4, %v2000
    %v2025 = vsel %vm1940, %v2024, %v2000
    %v2026 = vsel %vm1939, %v1935, %v2023
    %v2027 = vsel %vm1939, 0, %v2025
    %v2028 = vcosq.f32.pop %v2026
    %v2029 = vsinq.f32.pop %v2026
    %vm2030 = vweird.f32 %v1935
    %v2031 = vand.u32 %v2027, 3
    %vm2032 = vcmp.lt.s32.totalorder %v2031, 2
    %vm2033 = vcmp.eq.s32.totalorder %v2031, 0
    %v2034 = vxor.u32 %v2029, 2147483648
    %v2035 = vsel %vm2033, %v2028, %v2034
    %vm2036 = vcmp.eq.s32.totalorder %v2031, 2
    %v2037 = vxor.u32 %v2028, 2147483648
    %v2038 = vsel %vm2036, %v2037, %v2029
    %v2039 = vsel %vm2032, %v2035, %v2038
    %v2040 = vsel %vm2030, nan, %v2039
    %v2041 = vld [vmem:[%s7] sm:$0x3]
    %v2042 = vld [vmem:[%s8] sm:$0x3]
    %2044 = vset.pattern.permute.xlu0 0
    %2045 = vperm.xlu0 %2044, %v2042
    %v2046 = vpop.permute.xlu0 %2045
    %v2049 = vsel %vm1008, %v2041, 0
    %2051 = vmatprep.subr.mxu0 0.0
    %2052 = vmatpush1.msra.mxu0 %v1236
    %2053 = vmatprep.subr.mxu0 0.0
    %2054 = vmatpush1.msra.mxu0 %v1339
    %2055 = vmatprep.subr.mxu0 0.0
    %2056 = vmatpush1.msra.mxu0 %v1442
    %2057 = vmatprep.subr.mxu0 0.0
    %2058 = vmatpush1.msra.mxu0 %v1545
    %2059 = vmatprep.subr.mxu0 0.0
    %2060 = vmatpush1.msra.mxu0 %v1648
    %2061 = vmatprep.subr.mxu0 0.0
    %2062 = vmatpush1.msra.mxu0 %v1751
    %2063 = vmatprep.subr.mxu0 0.0
    %2064 = vmatpush1.msra.mxu0 %v1866
    %2065 = vmatprep.subr.mxu0 0.0
    %2066 = vmatpush1.msra.mxu0 0.0
    %2067 = vmatprep.subr.mxu0 0.0
    %2068 = vmatpush1.msra.mxu0 0.0
    %2069 = vmatprep.subr.mxu0 0.0
    %2070 = vmatpush1.msra.mxu0 0.0
    %2071 = vmatprep.subr.mxu0 0.0
    %2072 = vmatpush1.msra.mxu0 0.0
    %2073 = vmatprep.subr.mxu0 0.0
    %2074 = vmatpush1.msra.mxu0 0.0
    %2075 = vmatprep.subr.mxu0 0.0
    %2076 = vmatpush1.msra.mxu0 0.0
    %2077 = vmatprep.subr.mxu0 0.0
    %2078 = vmatpush1.msra.mxu0 0.0
    %2079 = vmatprep.subr.mxu0 0.0
    %2080 = vmatpush1.msra.mxu0 0.0
    %2081 = vmatprep.subr.mxu0 0.0
    %2082 = vmatpush1.msra.mxu0 0.0
    %2083 = vmatprep.subr.mxu0 0.0
    %2084 = vmatpush1.msra.mxu0 0.0
    %2085 = vmatprep.subr.mxu0 0.0
    %2086 = vmatpush1.msra.mxu0 0.0
    %2087 = vmatprep.subr.mxu0 0.0
    %2088 = vmatpush1.msra.mxu0 0.0
    %2089 = vmatprep.subr.mxu0 0.0
    %2090 = vmatpush1.msra.mxu0 0.0
    %2091 = vmatprep.subr.mxu0 0.0
    %2092 = vmatpush1.msra.mxu0 0.0
    %2093 = vmatprep.subr.mxu0 0.0
    %2094 = vmatpush1.msra.mxu0 0.0
    %2095 = vmatprep.subr.mxu0 0.0
    %2096 = vmatpush1.msra.mxu0 0.0
    %2097 = vmatprep.subr.mxu0 0.0
    %2098 = vmatpush1.msra.mxu0 0.0
    %2099 = vmatprep.subr.mxu0 0.0
    %2100 = vmatpush1.msra.mxu0 0.0
    %2101 = vmatprep.subr.mxu0 0.0
    %2102 = vmatpush1.msra.mxu0 0.0
    %2103 = vmatprep.subr.mxu0 0.0
    %2104 = vmatpush1.msra.mxu0 0.0
    %2105 = vmatprep.subr.mxu0 0.0
    %2106 = vmatpush1.msra.mxu0 0.0
    %2107 = vmatprep.subr.mxu0 0.0
    %2108 = vmatpush1.msra.mxu0 0.0
    %2109 = vmatprep.subr.mxu0 0.0
    %2110 = vmatpush1.msra.mxu0 0.0
    %2111 = vmatprep.subr.mxu0 0.0
    %2112 = vmatpush1.msra.mxu0 0.0
    %2113 = vmatprep.subr.mxu0 0.0
    %2114 = vmatpush1.msra.mxu0 0.0
    %2115 = vmatprep.mubr.f32.mxu0 0.0
    %2116 = vmatmul.mubr.f32.gmra.mrb[0].mxu0 %v2049
    %v2117 = vpop.f32.mrb[0].mxu0
    %v2118 = vadd.f32 %v2046, %v2117
    %v2119 = vpop.f32.mrb[0].mxu0
    %2120 = vdwg.mxu0
    %v2121 = vand.u32 2147483647, %v2118
    %vm2122 = vcmp.le.f32.partialorder %v2121, 0.7853982
    %vm2123 = vcmp.lt.s32.totalorder %v2118, 0
    %v2124 = vand.u32 %v2118, 2139095040
    %v2125 = vshrl.u32 %v2124, 23
    %v2126 = vsub.s32 %v2125, 127
    %v2127 = vand.u32 2147483647, %v2118
    %v2128 = vand.u32 %v2127, 8388607
    %v2129 = vor.u32 %v2128, 8388608
    %v2130 = vsub.s32 0, %v2129
    %v2131 = vadd.s32 %v2126, 1
    %vm2132 = vcmp.gt.s32.totalorder %v2131, 0
    %v2133 = vsel %vm2132, %v2131, 0
    %v2134 = vshrl.u32 %v2133, 5
    %v2135 = vand.u32 %v2133, 31
    %v2136 = vsub.s32 32, %v2135
    %v2137 = vshrl.u32 683565275, %v2136
    %v2138 = vshll.u32 683565275, %v2135
    %v2139 = vshrl.u32 2475754826, %v2136
    %v2140 = vor.u32 %v2138, %v2139
    %v2141 = vshll.u32 2475754826, %v2135
    %v2142 = vshrl.u32 2131351028, %v2136
    %v2143 = vor.u32 %v2141, %v2142
    %v2144 = vshll.u32 2131351028, %v2135
    %v2145 = vshrl.u32 2102212464, %v2136
    %v2146 = vor.u32 %v2144, %v2145
    %v2147 = vshll.u32 2102212464, %v2135
    %v2148 = vshrl.u32 920167782, %v2136
    %v2149 = vor.u32 %v2147, %v2148
    %v2150 = vshll.u32 920167782, %v2135
    %v2151 = vshrl.u32 1326507024, %v2136
    %v2152 = vor.u32 %v2150, %v2151
    %vm2153 = vcmp.lt.s32.totalorder %v2134, 1
    %vm2154 = vcmp.lt.s32.totalorder %v2134, 2
    %vm2155 = vcmp.lt.s32.totalorder %v2134, 3
    %vm2156 = vcmp.lt.s32.totalorder %v2134, 4
    %v2157 = vsel %vm2153, %v2137, %v2140
    %v2158 = vsel %vm2156, %v2146, 2102212464
    %v2159 = vsel %vm2155, %v2143, %v2158
    %v2160 = vsel %vm2154, %v2157, %v2159
    %v2161 = vsel %vm2153, %v2140, %v2143
    %v2162 = vsel %vm2156, %v2149, 920167782
    %v2163 = vsel %vm2155, %v2146, %v2162
    %v2164 = vsel %vm2154, %v2161, %v2163
    %v2165 = vsel %vm2153, %v2143, %v2146
    %v2166 = vsel %vm2156, %v2152, 1326507024
    %v2167 = vsel %vm2155, %v2149, %v2166
    %v2168 = vsel %vm2154, %v2165, %v2167
    %v2169 = vshll.u32 %v2129, 8
    %v2170 = vmul.u32.u64.compose %v2169, %v2168
    %v2171 = vextract.low.u32 %v2170
    %v2172 = vextract.high.u32 %v2170
    %v2173 = vmul.u32.u64.compose %v2169, %v2164
    %v2174 = vextract.low.u32 %v2173
    %v2175 = vextract.high.u32 %v2173
    %v2176 = vmul.u32 %v2169, %v2160
    %v2177 = vadd.s32 %v2172, %v2174
    %vm2178 = vc.u32 %v2172, %v2174
    %v2179 = vadd.s32 %v2175, 1
    %v2180 = vsel %vm2178, %v2179, %v2175
    %v2181 = vadd.s32 %v2176, %v2180
    %v2182 = vadd.s32 %v2181, 536870912
    %v2183 = vshrl.u32 %v2182, 30
    %v2184 = vshll.u32 %v2183, 30
    %v2185 = vsub.s32 %v2181, %v2184
    %vm2186 = vcmp.lt.s32.totalorder %v2185, 0
    %v2187 = vsub.s32 0, %v2185
    %v2188 = vsel %vm2186, %v2187, %v2185
    %v2189 = vclz %v2188
    %v2190 = vsub.s32 %v2189, 2
    %vm2191 = vcmp.gt.s32.totalorder 0, %v2190
    %v2192 = vsel %vm2191, 0, %v2190
    %v2193 = vsub.s32 32, %v2192
    %v2194 = vshll.u32 %v2185, %v2192
    %v2195 = vshrl.u32 %v2177, %v2193
    %v2196 = vor.u32 %v2194, %v2195
    %v2197 = vsub.s32 4294967266, %v2192
    %v2198 = vadd.s32 %v2197, 127
    %v2199 = vshll.u32 %v2198, 23
    %v2200 = vor.u32 4788187, %v2199
    %v2201 = vand.u32 2147483647, %v2200
    %v2203 = vcvt.s32.f32 %v2196
    %v2204 = vmul.f32 %v2203, %v2201
    %v2205 = vxor.u32 %v2204, 2147483648
    %v2206 = vsel %vm2123, %v2205, %v2204
    %v2207 = vsub.s32 4, %v2183
    %v2208 = vsel %vm2123, %v2207, %v2183
    %v2209 = vsel %vm2122, %v2118, %v2206
    %v2210 = vsel %vm2122, 0, %v2208
    %v2211 = vcosq.f32.pop %v2209
    %v2212 = vsinq.f32.pop %v2209
    %vm2213 = vweird.f32 %v2118
    %v2214 = vand.u32 %v2210, 3
    %vm2215 = vcmp.lt.s32.totalorder %v2214, 2
    %vm2216 = vcmp.eq.s32.totalorder %v2214, 0
    %v2217 = vxor.u32 %v2212, 2147483648
    %v2218 = vsel %vm2216, %v2211, %v2217
    %vm2219 = vcmp.eq.s32.totalorder %v2214, 2
    %v2220 = vxor.u32 %v2211, 2147483648
    %v2221 = vsel %vm2219, %v2220, %v2212
    %v2222 = vsel %vm2215, %v2218, %v2221
    %v2223 = vsel %vm2213, nan, %v2222
    %v2224 = vsel %vm34, 1, 0
    %v2225 = vlaneseq
    %v2226 = vshrl.u32 %v2225, 7
    %v2227 = vsub.s32 0, %v2226
    %v2228 = vrot.slane %v2224, %v2227
    %vm2229 = vcmp.eq.s32.totalorder %v2228, 1
    %v2230 = vsel %vm2229, %v2223, %v2040
    %2231 = vst [vmem:[#allocation2] sm:$0x3] %v2230
    // Predicated region
    $region38: #{tpu_custom_call.1} parent=1 // pred_check
      _
    $region39: #{tpu_custom_call.1} parent=1 // pred_check_branch
      %2233 = sbr.rel (0) target = $region41
    $region40: #{tpu_custom_call.1} parent=1 // pred_region
      %s2235 = ssub.s32 32, 32
      %2236 = vsyncadd [#allocation3], %s2235
      %s2238 = sshll.u32 [#allocation2], 4
      %s2239 = int_to_ptr.vmem [resolvable:$true] %s2238
      %2241 = dma.vmem_to_hbm [thread:$0]  %s2239, 32, %s9, [#allocation3]
    $region41: #{tpu_custom_call.1} parent=1 // pred_fallthru
      _
    // Predicated region
    $region42: #{tpu_custom_call.1} parent=1 // pred_check
      _
    $region43: #{tpu_custom_call.1} parent=1 // pred_check_branch
      %2243 = sbr.rel (0) target = $region45
    $region44: #{tpu_custom_call.1} parent=1 // pred_region
      %2244 = dma.done [#allocation3], 32
    $region45: #{tpu_custom_call.1} parent=1 // pred_fallthru
      _
    %2245 = vsyncpa [#allocation3], 1

</llo_original>
